<compile_context>
chip_gen: v5e
topology: v5e:2x2
jax: 0.10.0
libtpu: 0.0.40
codegen_flags: <defaults>
</compile_context>

<pallas_src>
import jax
import jax.numpy as jnp
from jax.experimental import pallas as pl
from jax.experimental.pallas import tpu as pltpu

KSIZE = 3  # kernel_size=3, padding=1 ("same")


# ----------------------------------------------------------------------------
# Kernel
# ----------------------------------------------------------------------------
def _make_kernel(G, Cin, Cout, TH, W, compute_dtype, use_mxu):
    C = G * Cin          # channels per grid step (G packed images)
    THW = TH * W         # lanes per grid step
    f32 = jnp.float32

    def gelu_exact(y):
        # Exact (erf-based) GELU matching torch.nn.GELU(); erf evaluated with the
        # Abramowitz-Stegun 7.1.26 polynomial (|err| <= 1.5e-7), so the kernel only
        # relies on exp/div (EUP) and basic VPU ops.
        inv_sqrt2 = 0.7071067811865476
        z = y * inv_sqrt2
        az = jnp.abs(z)
        t = 1.0 / (1.0 + 0.3275911 * az)
        poly = ((((1.061405429 * t - 1.453152027) * t + 1.421413741) * t
                 - 0.284496736) * t + 0.254829592) * t
        erf_abs = 1.0 - poly * jnp.exp(-az * az)
        erf = jnp.where(z >= 0.0, erf_abs, -erf_abs)
        return 0.5 * y * (1.0 + erf)

    def kernel(x_ref, halo_ref, dw_w_ref, dw_b_ref, pw_w_ref, o_ref):
        # x_ref:    (1, C, THW)        row-tile, spatial flattened onto lanes
        # halo_ref: (1, 1, 2, C, W)    [row above tile, row below tile] (zeros at border)
        # dw_w_ref: (9, C, 1)          depthwise taps, k = (di+1)*3 + (dj+1)
        # dw_b_ref: (C, 1)             depthwise bias (f32)
        # pw_w_ref: (Cin, Cout, 1)     pointwise weights (f32)
        # o_ref:    (1, G*Cout, THW)
        xc = x_ref[0].astype(compute_dtype)             # (C, THW)
        dw_w = dw_w_ref[...].astype(compute_dtype)      # (9, C, 1)
        dw_b = dw_b_ref[...]                            # (C, 1)  f32
        pw_w = pw_w_ref[...]                            # (Cin, Cout, 1) f32

        # Column-validity masks (left/right image border; also kill the row-wrap
        # of the +-1 lane rolls).  Computed once and pre-broadcast to (C, THW).
        col = jax.lax.broadcasted_iota(jnp.int32, (1, THW), 1) % W
        okl = jnp.broadcast_to(col > 0, (C, THW))
        okr = jnp.broadcast_to(col < (W - 1), (C, THW))

        def pointwise(a32):
            # Grouped 1x1 conv: (C, L) f32 -> (G*Cout, L) f32.
            pw_mat = pw_w[:, :, 0]                       # (Cin, Cout)
            outs = []
            for gi in range(G):
                a_g = a32[gi * Cin:(gi + 1) * Cin, :]
                if use_mxu:
                    lhs, rhs = pw_mat, a_g
                    if compute_dtype == jnp.bfloat16:
                        lhs = lhs.astype(jnp.bfloat16)
                        rhs = rhs.astype(jnp.bfloat16)
                    outs.append(jax.lax.dot_general(
                        lhs, rhs, (((0,), (0,)), ((), ())),
                        preferred_element_type=jnp.float32))
                else:
                    # Tiny Cin in f32: rank-1 VPU updates (MXU would be >90% padded
                    # and its default f32 operand handling is not needed here).
                    y = pw_w[0] * a_g[0:1, :]
                    for ci in range(1, Cin):
                        y = y + pw_w[ci] * a_g[ci:ci + 1, :]
                    outs.append(y)
            return outs[0] if G == 1 else jnp.concatenate(outs, axis=0)

        # ---- depthwise 3x3 over the whole tile.  All 8 neighbour taps come from
        # pltpu.roll (XLU); the rows 0 / TH-1 pick up row-wrap garbage which is
        # recomputed exactly (with the halo rows) and overwritten below, so no
        # row masks and no up/down concat copies are needed.
        acc = xc * dw_w[4]                               # centre tap seeds the accumulator
        for di in (-1, 0, 1):
            for dj in (-1, 0, 1):
                if di == 0 and dj == 0:
                    continue
                k = (di + 1) * KSIZE + (dj + 1)
                tap = pltpu.roll(xc, (-(di * W + dj)) % THW, axis=1)   # tap[p] = x[p + di*W + dj]
                if dj == 1:
                    tap = jnp.where(okr, tap, 0.0)
                elif dj == -1:
                    tap = jnp.where(okl, tap, 0.0)
                acc = acc + tap * dw_w[k]
        acc = acc.astype(f32) + dw_b                     # (C, THW) f32

        y = gelu_exact(pointwise(acc))                   # (G*Cout, THW) f32
        o_ref[0] = y.astype(o_ref.dtype)                 # lane-dense, unmasked stores

        # ---- exact recompute of the two boundary rows using the halo rows.
        top = halo_ref[0, 0, 0].astype(compute_dtype)    # (C, W)
        bot = halo_ref[0, 0, 1].astype(compute_dtype)    # (C, W)
        x_first = xc[:, :W]
        x_last = xc[:, (TH - 1) * W:]
        below_first = xc[:, W:2 * W] if TH > 1 else bot
        above_last = xc[:, (TH - 2) * W:(TH - 1) * W] if TH > 1 else top

        def hshift(a, dj):
            if dj == 0:
                return a
            zc = jnp.zeros((C, 1), a.dtype)
            if dj == 1:
                return jnp.concatenate([a[:, 1:], zc], axis=1)      # a[:, c+1], 0 at right edge
            return jnp.concatenate([zc, a[:, :W - 1]], axis=1)      # a[:, c-1], 0 at left edge

        def dw_row(above, cur, below):
            r = cur * dw_w[4]
            for di, src in ((-1, above), (0, cur), (1, below)):
                for dj in (-1, 0, 1):
                    if di == 0 and dj == 0:
                        continue
                    r = r + hshift(src, dj) * dw_w[(di + 1) * KSIZE + (dj + 1)]
            return r.astype(f32) + dw_b

        y_first = gelu_exact(pointwise(dw_row(top, x_first, below_first)))
        y_last = gelu_exact(pointwise(dw_row(above_last, x_last, bot)))
        o_ref[0, :, :W] = y_first.astype(o_ref.dtype)
        o_ref[0, :, (TH - 1) * W:] = y_last.astype(o_ref.dtype)

    return kernel


# ----------------------------------------------------------------------------
# Tile / group selection
# ----------------------------------------------------------------------------
def _tile_bytes(th, W, C, Co, itemsize):
    """Per-grid-step VMEM estimate: double-buffered I/O blocks + f32 kernel temps."""
    thw = th * W
    io = 2 * ((C + Co) * thw + 2 * C * W) * itemsize
    temps = (4 * C + Co + 2) * thw * 4
    return io + temps + (1 << 16)          # + small slack for params/masks


def _pick_group(N, Cin, itemsize):
    """Number of batch images whose channels are stacked on sublanes per step."""
    sub = 8 if itemsize >= 4 else 16
    if Cin >= sub or N == 1:
        return 1
    g_max = max(1, sub // Cin)
    g = 1
    for d in range(1, g_max + 1):
        if N % d == 0:
            g = d
    return g


def _pick_tile_h(H, W, C, Co, itemsize, budget):
    cands = [th for th in range(1, H + 1)
             if H % th == 0 and ((th * W) % 128 == 0 or th == H)]
    fit = [th for th in cands if _tile_bytes(th, W, C, Co, itemsize) <= budget]
    dense_fit = [th for th in fit if (th * W) % 128 == 0]
    if dense_fit:
        return max(dense_fit)       # biggest lane-dense tile that fits
    if fit:
        return max(fit)
    return min(cands)


# ----------------------------------------------------------------------------
# Wrapper
# ----------------------------------------------------------------------------
def dwsconv_pallas(x_nchw, dw_weight, dw_bias, pw_weight, *, tile_h=None, group=None):
    """x: (N, Cin, H, W); dw_weight: (Cin, 1, 3, 3); dw_bias: (Cin,);
    pw_weight: (Cout, Cin, 1, 1).  Returns (N, Cout, H, W)."""
    N, Cin, H, W = x_nchw.shape
    Cout = pw_weight.shape[0]
    assert dw_weight.shape == (Cin, 1, KSIZE, KSIZE)
    assert pw_weight.shape == (Cout, Cin, 1, 1)
    assert dw_bias.shape == (Cin,)
    HW = H * W
    dtype = x_nchw.dtype
    itemsize = dtype.itemsize
    compute_dtype = jnp.bfloat16 if dtype == jnp.bfloat16 else jnp.float32

    # Device-aware VMEM budget (v7x: 64 MiB/TC -> ~38 MiB; v5e/v6e: 128 MiB -> ~77 MiB).
    try:
        vmem_cap = int(getattr(pltpu.get_tpu_info(), "vmem_capacity_bytes", 64 << 20))
    except Exception:
        vmem_cap = 64 << 20
    budget = int(min(max(0.6 * vmem_cap, 16 << 20), 96 << 20))

    # Sublane packing: stack `g` batch images' channels per grid step.
    g = _pick_group(N, Cin, itemsize) if group is None else group
    assert g >= 1 and N % g == 0
    C, Co = g * Cin, g * Cout

    # Byte-based row-tile pick.
    if tile_h is None:
        TH = _pick_tile_h(H, W, C, Co, itemsize, budget)
        # v7x has 2 TensorCores per chip: guarantee >= 2 grid steps when possible
        # (costs only one extra ~0.35 us step on single-TC v5e/v6e).
        if (N // g) * (H // TH) < 2:
            smaller = [th for th in range(1, TH)
                       if H % th == 0 and (th * W) % 128 == 0
                       and _tile_bytes(th, W, C, Co, itemsize) <= budget]
            if smaller:
                TH = max(smaller)
    else:
        TH = tile_h
    assert H % TH == 0, "tile_h must divide H"
    nT = H // TH
    THW = TH * W

    # Operand prep (metadata-only reshapes for x / output; tiny arrays otherwise).
    x_flat = x_nchw.reshape(N // g, C, HW)

    zrow = jnp.zeros((N, Cin, 1, W), dtype)
    if nT > 1:
        top_halo = jnp.concatenate([zrow, x_nchw[:, :, TH - 1:H - 1:TH, :]], axis=2)
        bot_halo = jnp.concatenate([x_nchw[:, :, TH:H:TH, :], zrow], axis=2)
    else:
        top_halo, bot_halo = zrow, zrow
    halo = jnp.stack([top_halo, bot_halo], axis=0)          # (2, N, Cin, nT, W)
    halo = jnp.transpose(halo, (1, 3, 0, 2, 4))             # (N, nT, 2, Cin, W)
    if g > 1:
        halo = halo.reshape(N // g, g, nT, 2, Cin, W)
        halo = jnp.transpose(halo, (0, 2, 3, 1, 4, 5)).reshape(N // g, nT, 2, C, W)
    else:
        halo = halo.reshape(N // g, nT, 2, C, W)

    dw_w = jnp.transpose(dw_weight[:, 0, :, :], (1, 2, 0)).reshape(KSIZE * KSIZE, Cin)
    dw_w = jnp.tile(dw_w, (1, g)).reshape(KSIZE * KSIZE, C, 1).astype(jnp.float32)
    dw_b = jnp.tile(dw_bias.reshape(1, Cin), (1, g)).reshape(C, 1).astype(jnp.float32)
    pw_w = jnp.transpose(pw_weight[:, :, 0, 0], (1, 0)).reshape(Cin, Cout, 1).astype(jnp.float32)

    # MXU for the 1x1 when channels are big enough, or whenever activations are bf16.
    use_mxu = (Cin >= 8) or (compute_dtype == jnp.bfloat16)

    est = _tile_bytes(TH, W, C, Co, itemsize)
    vmem_limit = int(min(max(budget, est + (4 << 20)), int(0.9 * vmem_cap)))

    kernel = _make_kernel(g, Cin, Cout, TH, W, compute_dtype, use_mxu)

    out_flat = pl.pallas_call(
        kernel,
        out_shape=jax.ShapeDtypeStruct((N // g, Co, HW), dtype),
        grid_spec=pltpu.PrefetchScalarGridSpec(
            num_scalar_prefetch=0,
            grid=(N // g, nT),
            in_specs=[
                pl.BlockSpec((1, C, THW), lambda n, t: (n, 0, t)),
                pl.BlockSpec((1, 1, 2, C, W), lambda n, t: (n, t, 0, 0, 0)),
                pl.BlockSpec((KSIZE * KSIZE, C, 1), lambda n, t: (0, 0, 0)),
                pl.BlockSpec((C, 1), lambda n, t: (0, 0)),
                pl.BlockSpec((Cin, Cout, 1), lambda n, t: (0, 0, 0)),
            ],
            out_specs=pl.BlockSpec((1, Co, THW), lambda n, t: (n, 0, t)),
        ),
        compiler_params=pltpu.CompilerParams(
            dimension_semantics=("parallel", "parallel"),
            vmem_limit_bytes=vmem_limit,
        ),
    )(x_flat, halo, dw_w, dw_b, pw_w)

    return out_flat.reshape(N, Cout, H, W)   # metadata-only reshape back to NCHW


# ----------------------------------------------------------------------------
# Pure-JAX reference (for correctness checking)
# ----------------------------------------------------------------------------
def _reference(x_nchw, dw_weight, dw_bias, pw_weight):
    Cin = x_nchw.shape[1]
    y = jax.lax.conv_general_dilated(
        x_nchw, dw_weight, window_strides=(1, 1), padding=((1, 1), (1, 1)),
        dimension_numbers=("NCHW", "OIHW", "NCHW"), feature_group_count=Cin,
        precision=jax.lax.Precision.HIGHEST)
    y = y + dw_bias[None, :, None, None]
    y = jax.lax.conv_general_dilated(
        y, pw_weight, window_strides=(1, 1), padding=((0, 0), (0, 0)),
        dimension_numbers=("NCHW", "OIHW", "NCHW"),
        precision=jax.lax.Precision.HIGHEST)
    return jax.nn.gelu(y, approximate=False)


if __name__ == "__main__":
    N, Cin, Cout, H, W = 2, 4, 8, 16, 16

    key = jax.random.PRNGKey(0)
    k_x, k_dw, k_db, k_pw = jax.random.split(key, 4)

    x = jax.random.normal(k_x, (N, Cin, H, W), dtype=jnp.float32)
    dw_weight = jax.random.normal(k_dw, (Cin, 1, KSIZE, KSIZE), dtype=jnp.float32) * 0.2
    dw_bias = jax.random.normal(k_db, (Cin,), dtype=jnp.float32) * 0.1
    pw_weight = jax.random.normal(k_pw, (Cout, Cin, 1, 1), dtype=jnp.float32) * 0.3

    # Auto tiling: g=2 images packed per step, TH=8 -> grid (1, 2), exercising
    # the sublane-packing and halo paths.
    out = dwsconv_pallas(x, dw_weight, dw_bias, pw_weight)
    out = jax.block_until_ready(out)

    ref = _reference(x, dw_weight, dw_bias, pw_weight)
    assert out.shape == (N, Cout, H, W)
    err = float(jnp.max(jnp.abs(out - ref)))
    assert err < 1e-4, f"mismatch vs reference: max abs err {err}"

    print("KERNEL_OK")
</pallas_src>

<mosaic_0001>
module attributes {stable_mosaic.version = 11 : i64} {
  func.func @kernel(%arg0: i32, %arg1: i32, %arg2: memref<1x8x128xf32, #tpu.memory_space<vmem>>, %arg3: memref<1x1x2x8x16xf32, #tpu.memory_space<vmem>>, %arg4: memref<9x8x1xf32, #tpu.memory_space<vmem>>, %arg5: memref<8x1xf32, #tpu.memory_space<vmem>>, %arg6: memref<4x8x1xf32, #tpu.memory_space<vmem>>, %arg7: memref<1x16x128xf32, #tpu.memory_space<vmem>>) attributes {dimension_semantics = [#tpu.dimension_semantics<parallel>, #tpu.dimension_semantics<parallel>], iteration_bounds = array<i64: 1, 2>, scalar_prefetch = 0 : i64, scratch_operands = 0 : i64, tpu.core_type = #tpu.core_type<tc>, window_params = [{transform_indices = @transform_0, window_bounds = array<i64: 1, 8, 128>}, {transform_indices = @transform_1, window_bounds = array<i64: 1, 1, 2, 8, 16>}, {pipeline_mode = #tpu.pipeline_mode<synchronous>, transform_indices = @transform_2, window_bounds = array<i64: 9, 8, 1>}, {pipeline_mode = #tpu.pipeline_mode<synchronous>, transform_indices = @transform_3, window_bounds = array<i64: 8, 1>}, {pipeline_mode = #tpu.pipeline_mode<synchronous>, transform_indices = @transform_4, window_bounds = array<i64: 4, 8, 1>}, {transform_indices = @transform_5, window_bounds = array<i64: 1, 16, 128>}]} {
    %c0 = arith.constant 0 : index
    %c0_0 = arith.constant 0 : index
    %c0_1 = arith.constant 0 : index
    %0 = vector.load %arg2[%c0, %c0_0, %c0_1] : memref<1x8x128xf32, #tpu.memory_space<vmem>>, vector<1x8x128xf32>
    %1 = vector.shape_cast %0 : vector<1x8x128xf32> to vector<8x128xf32>
    %c0_2 = arith.constant 0 : index
    %c0_3 = arith.constant 0 : index
    %c0_4 = arith.constant 0 : index
    %2 = vector.load %arg4[%c0_2, %c0_3, %c0_4] : memref<9x8x1xf32, #tpu.memory_space<vmem>>, vector<9x8x1xf32>
    %c0_5 = arith.constant 0 : index
    %c0_6 = arith.constant 0 : index
    %3 = vector.load %arg5[%c0_5, %c0_6] : memref<8x1xf32, #tpu.memory_space<vmem>>, vector<8x1xf32>
    %c0_7 = arith.constant 0 : index
    %c0_8 = arith.constant 0 : index
    %c0_9 = arith.constant 0 : index
    %4 = vector.load %arg6[%c0_7, %c0_8, %c0_9] : memref<4x8x1xf32, #tpu.memory_space<vmem>>, vector<4x8x1xf32>
    %5 = tpu.iota {dimensions = array<i32: 1>} : vector<1x128xi32>
    %c16_i32 = arith.constant 16 : i32
    %c0_i32 = arith.constant 0 : i32
    %6 = arith.cmpi eq, %c16_i32, %c0_i32 : i32
    %c1_i32 = arith.constant 1 : i32
    %7 = arith.select %6, %c1_i32, %c16_i32 : i32
    %8 = vector.broadcast %7 : i32 to vector<1x128xi32>
    %9 = arith.remsi %5, %8 : vector<1x128xi32>
    %c0_i32_10 = arith.constant 0 : i32
    %10 = vector.broadcast %c0_i32_10 : i32 to vector<1x128xi32>
    %11 = arith.cmpi ne, %9, %10 : vector<1x128xi32>
    %c0_i32_11 = arith.constant 0 : i32
    %12 = vector.broadcast %c0_i32_11 : i32 to vector<1x128xi32>
    %13 = arith.cmpi slt, %9, %12 : vector<1x128xi32>
    %c0_i32_12 = arith.constant 0 : i32
    %14 = arith.cmpi slt, %7, %c0_i32_12 : i32
    %15 = vector.broadcast %14 : i1 to vector<1x128xi1>
    %16 = vector.broadcast %15 : vector<1x128xi1> to vector<1x128xi1>
    %17 = arith.xori %13, %16 : vector<1x128xi1>
    %18 = arith.andi %17, %11 : vector<1x128xi1>
    %19 = vector.broadcast %7 : i32 to vector<1x128xi32>
    %20 = arith.addi %9, %19 : vector<1x128xi32>
    %21 = arith.select %18, %20, %9 : vector<1x128xi1>, vector<1x128xi32>
    %c0_i32_13 = arith.constant 0 : i32
    %22 = vector.broadcast %c0_i32_13 : i32 to vector<1x128xi32>
    %23 = arith.cmpi sgt, %21, %22 : vector<1x128xi32>
    %24 = vector.shape_cast %23 : vector<1x128xi1> to vector<1x128xi1>
    %25 = vector.broadcast %24 : vector<1x128xi1> to vector<8x128xi1>
    %c15_i32 = arith.constant 15 : i32
    %26 = vector.broadcast %c15_i32 : i32 to vector<1x128xi32>
    %27 = arith.cmpi slt, %21, %26 : vector<1x128xi32>
    %28 = vector.shape_cast %27 : vector<1x128xi1> to vector<1x128xi1>
    %29 = vector.broadcast %28 : vector<1x128xi1> to vector<8x128xi1>
    %30 = vector.extract_strided_slice %2 {offsets = [4, 0, 0], sizes = [1, 8, 1], strides = [1, 1, 1]} : vector<9x8x1xf32> to vector<1x8x1xf32>
    %31 = vector.shape_cast %30 : vector<1x8x1xf32> to vector<8x1xf32>
    %32 = vector.broadcast %31 : vector<8x1xf32> to vector<8x128xf32>
    %33 = arith.mulf %1, %32 : vector<8x128xf32>
    %c17_i32 = arith.constant 17 : i32
    %34 = tpu.dynamic_rotate %1 by %c17_i32 dim 1 : vector<8x128xf32>, i32 -> vector<8x128xf32>
    %cst = arith.constant 0.000000e+00 : f32
    %35 = vector.broadcast %cst : f32 to vector<8x128xf32>
    %36 = arith.select %25, %34, %35 : vector<8x128xi1>, vector<8x128xf32>
    %37 = vector.extract_strided_slice %2 {offsets = [0, 0, 0], sizes = [1, 8, 1], strides = [1, 1, 1]} : vector<9x8x1xf32> to vector<1x8x1xf32>
    %38 = vector.shape_cast %37 : vector<1x8x1xf32> to vector<8x1xf32>
    %39 = vector.broadcast %38 : vector<8x1xf32> to vector<8x128xf32>
    %40 = arith.mulf %36, %39 : vector<8x128xf32>
    %41 = arith.addf %33, %40 : vector<8x128xf32>
    %c16_i32_14 = arith.constant 16 : i32
    %42 = tpu.dynamic_rotate %1 by %c16_i32_14 dim 1 : vector<8x128xf32>, i32 -> vector<8x128xf32>
    %43 = vector.extract_strided_slice %2 {offsets = [1, 0, 0], sizes = [1, 8, 1], strides = [1, 1, 1]} : vector<9x8x1xf32> to vector<1x8x1xf32>
    %44 = vector.shape_cast %43 : vector<1x8x1xf32> to vector<8x1xf32>
    %45 = vector.broadcast %44 : vector<8x1xf32> to vector<8x128xf32>
    %46 = arith.mulf %42, %45 : vector<8x128xf32>
    %47 = arith.addf %41, %46 : vector<8x128xf32>
    %c15_i32_15 = arith.constant 15 : i32
    %48 = tpu.dynamic_rotate %1 by %c15_i32_15 dim 1 : vector<8x128xf32>, i32 -> vector<8x128xf32>
    %cst_16 = arith.constant 0.000000e+00 : f32
    %49 = vector.broadcast %cst_16 : f32 to vector<8x128xf32>
    %50 = arith.select %29, %48, %49 : vector<8x128xi1>, vector<8x128xf32>
    %51 = vector.extract_strided_slice %2 {offsets = [2, 0, 0], sizes = [1, 8, 1], strides = [1, 1, 1]} : vector<9x8x1xf32> to vector<1x8x1xf32>
    %52 = vector.shape_cast %51 : vector<1x8x1xf32> to vector<8x1xf32>
    %53 = vector.broadcast %52 : vector<8x1xf32> to vector<8x128xf32>
    %54 = arith.mulf %50, %53 : vector<8x128xf32>
    %55 = arith.addf %47, %54 : vector<8x128xf32>
    %c1_i32_17 = arith.constant 1 : i32
    %56 = tpu.dynamic_rotate %1 by %c1_i32_17 dim 1 : vector<8x128xf32>, i32 -> vector<8x128xf32>
    %cst_18 = arith.constant 0.000000e+00 : f32
    %57 = vector.broadcast %cst_18 : f32 to vector<8x128xf32>
    %58 = arith.select %25, %56, %57 : vector<8x128xi1>, vector<8x128xf32>
    %59 = vector.extract_strided_slice %2 {offsets = [3, 0, 0], sizes = [1, 8, 1], strides = [1, 1, 1]} : vector<9x8x1xf32> to vector<1x8x1xf32>
    %60 = vector.shape_cast %59 : vector<1x8x1xf32> to vector<8x1xf32>
    %61 = vector.broadcast %60 : vector<8x1xf32> to vector<8x128xf32>
    %62 = arith.mulf %58, %61 : vector<8x128xf32>
    %63 = arith.addf %55, %62 : vector<8x128xf32>
    %c127_i32 = arith.constant 127 : i32
    %64 = tpu.dynamic_rotate %1 by %c127_i32 dim 1 : vector<8x128xf32>, i32 -> vector<8x128xf32>
    %cst_19 = arith.constant 0.000000e+00 : f32
    %65 = vector.broadcast %cst_19 : f32 to vector<8x128xf32>
    %66 = arith.select %29, %64, %65 : vector<8x128xi1>, vector<8x128xf32>
    %67 = vector.extract_strided_slice %2 {offsets = [5, 0, 0], sizes = [1, 8, 1], strides = [1, 1, 1]} : vector<9x8x1xf32> to vector<1x8x1xf32>
    %68 = vector.shape_cast %67 : vector<1x8x1xf32> to vector<8x1xf32>
    %69 = vector.broadcast %68 : vector<8x1xf32> to vector<8x128xf32>
    %70 = arith.mulf %66, %69 : vector<8x128xf32>
    %71 = arith.addf %63, %70 : vector<8x128xf32>
    %c113_i32 = arith.constant 113 : i32
    %72 = tpu.dynamic_rotate %1 by %c113_i32 dim 1 : vector<8x128xf32>, i32 -> vector<8x128xf32>
    %cst_20 = arith.constant 0.000000e+00 : f32
    %73 = vector.broadcast %cst_20 : f32 to vector<8x128xf32>
    %74 = arith.select %25, %72, %73 : vector<8x128xi1>, vector<8x128xf32>
    %75 = vector.extract_strided_slice %2 {offsets = [6, 0, 0], sizes = [1, 8, 1], strides = [1, 1, 1]} : vector<9x8x1xf32> to vector<1x8x1xf32>
    %76 = vector.shape_cast %75 : vector<1x8x1xf32> to vector<8x1xf32>
    %77 = vector.broadcast %76 : vector<8x1xf32> to vector<8x128xf32>
    %78 = arith.mulf %74, %77 : vector<8x128xf32>
    %79 = arith.addf %71, %78 : vector<8x128xf32>
    %c112_i32 = arith.constant 112 : i32
    %80 = tpu.dynamic_rotate %1 by %c112_i32 dim 1 : vector<8x128xf32>, i32 -> vector<8x128xf32>
    %81 = vector.extract_strided_slice %2 {offsets = [7, 0, 0], sizes = [1, 8, 1], strides = [1, 1, 1]} : vector<9x8x1xf32> to vector<1x8x1xf32>
    %82 = vector.shape_cast %81 : vector<1x8x1xf32> to vector<8x1xf32>
    %83 = vector.broadcast %82 : vector<8x1xf32> to vector<8x128xf32>
    %84 = arith.mulf %80, %83 : vector<8x128xf32>
    %85 = arith.addf %79, %84 : vector<8x128xf32>
    %c111_i32 = arith.constant 111 : i32
    %86 = tpu.dynamic_rotate %1 by %c111_i32 dim 1 : vector<8x128xf32>, i32 -> vector<8x128xf32>
    %cst_21 = arith.constant 0.000000e+00 : f32
    %87 = vector.broadcast %cst_21 : f32 to vector<8x128xf32>
    %88 = arith.select %29, %86, %87 : vector<8x128xi1>, vector<8x128xf32>
    %89 = vector.extract_strided_slice %2 {offsets = [8, 0, 0], sizes = [1, 8, 1], strides = [1, 1, 1]} : vector<9x8x1xf32> to vector<1x8x1xf32>
    %90 = vector.shape_cast %89 : vector<1x8x1xf32> to vector<8x1xf32>
    %91 = vector.broadcast %90 : vector<8x1xf32> to vector<8x128xf32>
    %92 = arith.mulf %88, %91 : vector<8x128xf32>
    %93 = arith.addf %85, %92 : vector<8x128xf32>
    %94 = vector.broadcast %3 : vector<8x1xf32> to vector<8x128xf32>
    %95 = arith.addf %93, %94 : vector<8x128xf32>
    %96 = vector.extract_strided_slice %95 {offsets = [0, 0], sizes = [4, 128], strides = [1, 1]} : vector<8x128xf32> to vector<4x128xf32>
    %97 = vector.extract_strided_slice %4 {offsets = [0, 0, 0], sizes = [1, 8, 1], strides = [1, 1, 1]} : vector<4x8x1xf32> to vector<1x8x1xf32>
    %98 = vector.shape_cast %97 : vector<1x8x1xf32> to vector<8x1xf32>
    %99 = vector.extract_strided_slice %96 {offsets = [0, 0], sizes = [1, 128], strides = [1, 1]} : vector<4x128xf32> to vector<1x128xf32>
    %100 = vector.broadcast %98 : vector<8x1xf32> to vector<8x128xf32>
    %101 = vector.broadcast %99 : vector<1x128xf32> to vector<8x128xf32>
    %102 = arith.mulf %100, %101 : vector<8x128xf32>
    %103 = vector.extract_strided_slice %4 {offsets = [1, 0, 0], sizes = [1, 8, 1], strides = [1, 1, 1]} : vector<4x8x1xf32> to vector<1x8x1xf32>
    %104 = vector.shape_cast %103 : vector<1x8x1xf32> to vector<8x1xf32>
    %105 = vector.extract_strided_slice %96 {offsets = [1, 0], sizes = [1, 128], strides = [1, 1]} : vector<4x128xf32> to vector<1x128xf32>
    %106 = vector.broadcast %104 : vector<8x1xf32> to vector<8x128xf32>
    %107 = vector.broadcast %105 : vector<1x128xf32> to vector<8x128xf32>
    %108 = arith.mulf %106, %107 : vector<8x128xf32>
    %109 = arith.addf %102, %108 : vector<8x128xf32>
    %110 = vector.extract_strided_slice %4 {offsets = [2, 0, 0], sizes = [1, 8, 1], strides = [1, 1, 1]} : vector<4x8x1xf32> to vector<1x8x1xf32>
    %111 = vector.shape_cast %110 : vector<1x8x1xf32> to vector<8x1xf32>
    %112 = vector.extract_strided_slice %96 {offsets = [2, 0], sizes = [1, 128], strides = [1, 1]} : vector<4x128xf32> to vector<1x128xf32>
    %113 = vector.broadcast %111 : vector<8x1xf32> to vector<8x128xf32>
    %114 = vector.broadcast %112 : vector<1x128xf32> to vector<8x128xf32>
    %115 = arith.mulf %113, %114 : vector<8x128xf32>
    %116 = arith.addf %109, %115 : vector<8x128xf32>
    %117 = vector.extract_strided_slice %4 {offsets = [3, 0, 0], sizes = [1, 8, 1], strides = [1, 1, 1]} : vector<4x8x1xf32> to vector<1x8x1xf32>
    %118 = vector.shape_cast %117 : vector<1x8x1xf32> to vector<8x1xf32>
    %119 = vector.extract_strided_slice %96 {offsets = [3, 0], sizes = [1, 128], strides = [1, 1]} : vector<4x128xf32> to vector<1x128xf32>
    %120 = vector.broadcast %118 : vector<8x1xf32> to vector<8x128xf32>
    %121 = vector.broadcast %119 : vector<1x128xf32> to vector<8x128xf32>
    %122 = arith.mulf %120, %121 : vector<8x128xf32>
    %123 = arith.addf %116, %122 : vector<8x128xf32>
    %124 = vector.extract_strided_slice %95 {offsets = [4, 0], sizes = [4, 128], strides = [1, 1]} : vector<8x128xf32> to vector<4x128xf32>
    %125 = vector.extract_strided_slice %4 {offsets = [0, 0, 0], sizes = [1, 8, 1], strides = [1, 1, 1]} : vector<4x8x1xf32> to vector<1x8x1xf32>
    %126 = vector.shape_cast %125 : vector<1x8x1xf32> to vector<8x1xf32>
    %127 = vector.extract_strided_slice %124 {offsets = [0, 0], sizes = [1, 128], strides = [1, 1]} : vector<4x128xf32> to vector<1x128xf32>
    %128 = vector.broadcast %126 : vector<8x1xf32> to vector<8x128xf32>
    %129 = vector.broadcast %127 : vector<1x128xf32> to vector<8x128xf32>
    %130 = arith.mulf %128, %129 : vector<8x128xf32>
    %131 = vector.extract_strided_slice %4 {offsets = [1, 0, 0], sizes = [1, 8, 1], strides = [1, 1, 1]} : vector<4x8x1xf32> to vector<1x8x1xf32>
    %132 = vector.shape_cast %131 : vector<1x8x1xf32> to vector<8x1xf32>
    %133 = vector.extract_strided_slice %124 {offsets = [1, 0], sizes = [1, 128], strides = [1, 1]} : vector<4x128xf32> to vector<1x128xf32>
    %134 = vector.broadcast %132 : vector<8x1xf32> to vector<8x128xf32>
    %135 = vector.broadcast %133 : vector<1x128xf32> to vector<8x128xf32>
    %136 = arith.mulf %134, %135 : vector<8x128xf32>
    %137 = arith.addf %130, %136 : vector<8x128xf32>
    %138 = vector.extract_strided_slice %4 {offsets = [2, 0, 0], sizes = [1, 8, 1], strides = [1, 1, 1]} : vector<4x8x1xf32> to vector<1x8x1xf32>
    %139 = vector.shape_cast %138 : vector<1x8x1xf32> to vector<8x1xf32>
    %140 = vector.extract_strided_slice %124 {offsets = [2, 0], sizes = [1, 128], strides = [1, 1]} : vector<4x128xf32> to vector<1x128xf32>
    %141 = vector.broadcast %139 : vector<8x1xf32> to vector<8x128xf32>
    %142 = vector.broadcast %140 : vector<1x128xf32> to vector<8x128xf32>
    %143 = arith.mulf %141, %142 : vector<8x128xf32>
    %144 = arith.addf %137, %143 : vector<8x128xf32>
    %145 = vector.extract_strided_slice %4 {offsets = [3, 0, 0], sizes = [1, 8, 1], strides = [1, 1, 1]} : vector<4x8x1xf32> to vector<1x8x1xf32>
    %146 = vector.shape_cast %145 : vector<1x8x1xf32> to vector<8x1xf32>
    %147 = vector.extract_strided_slice %124 {offsets = [3, 0], sizes = [1, 128], strides = [1, 1]} : vector<4x128xf32> to vector<1x128xf32>
    %148 = vector.broadcast %146 : vector<8x1xf32> to vector<8x128xf32>
    %149 = vector.broadcast %147 : vector<1x128xf32> to vector<8x128xf32>
    %150 = arith.mulf %148, %149 : vector<8x128xf32>
    %151 = arith.addf %144, %150 : vector<8x128xf32>
    %152 = tpu.concatenate %123, %151 in 0 : vector<8x128xf32>, vector<8x128xf32> -> vector<16x128xf32>
    %cst_22 = arith.constant 0.707106769 : f32
    %153 = vector.broadcast %cst_22 : f32 to vector<16x128xf32>
    %154 = arith.mulf %152, %153 : vector<16x128xf32>
    %155 = math.absf %154 : vector<16x128xf32>
    %cst_23 = arith.constant 0.327591091 : f32
    %156 = vector.broadcast %cst_23 : f32 to vector<16x128xf32>
    %157 = arith.mulf %156, %155 : vector<16x128xf32>
    %cst_24 = arith.constant 1.000000e+00 : f32
    %158 = vector.broadcast %cst_24 : f32 to vector<16x128xf32>
    %159 = arith.addf %158, %157 : vector<16x128xf32>
    %cst_25 = arith.constant 1.000000e+00 : f32
    %160 = vector.broadcast %cst_25 : f32 to vector<16x128xf32>
    %161 = arith.divf %160, %159 : vector<16x128xf32>
    %cst_26 = arith.constant 1.06140542 : f32
    %162 = vector.broadcast %cst_26 : f32 to vector<16x128xf32>
    %163 = arith.mulf %162, %161 : vector<16x128xf32>
    %cst_27 = arith.constant 1.45315206 : f32
    %164 = vector.broadcast %cst_27 : f32 to vector<16x128xf32>
    %165 = arith.subf %163, %164 : vector<16x128xf32>
    %166 = arith.mulf %165, %161 : vector<16x128xf32>
    %cst_28 = arith.constant 1.42141378 : f32
    %167 = vector.broadcast %cst_28 : f32 to vector<16x128xf32>
    %168 = arith.addf %166, %167 : vector<16x128xf32>
    %169 = arith.mulf %168, %161 : vector<16x128xf32>
    %cst_29 = arith.constant 0.284496725 : f32
    %170 = vector.broadcast %cst_29 : f32 to vector<16x128xf32>
    %171 = arith.subf %169, %170 : vector<16x128xf32>
    %172 = arith.mulf %171, %161 : vector<16x128xf32>
    %cst_30 = arith.constant 0.254829586 : f32
    %173 = vector.broadcast %cst_30 : f32 to vector<16x128xf32>
    %174 = arith.addf %172, %173 : vector<16x128xf32>
    %175 = arith.mulf %174, %161 : vector<16x128xf32>
    %cst_31 = arith.constant 0.000000e+00 : f32
    %176 = vector.broadcast %cst_31 : f32 to vector<16x128xf32>
    %177 = arith.subf %176, %155 : vector<16x128xf32>
    %178 = arith.mulf %177, %155 : vector<16x128xf32>
    %179 = math.exp %178 : vector<16x128xf32>
    %180 = arith.mulf %175, %179 : vector<16x128xf32>
    %cst_32 = arith.constant 1.000000e+00 : f32
    %181 = vector.broadcast %cst_32 : f32 to vector<16x128xf32>
    %182 = arith.subf %181, %180 : vector<16x128xf32>
    %cst_33 = arith.constant 0.000000e+00 : f32
    %183 = vector.broadcast %cst_33 : f32 to vector<16x128xf32>
    %184 = arith.cmpf oge, %154, %183 : vector<16x128xf32>
    %cst_34 = arith.constant 0.000000e+00 : f32
    %185 = vector.broadcast %cst_34 : f32 to vector<16x128xf32>
    %186 = arith.subf %185, %182 : vector<16x128xf32>
    %187 = arith.select %184, %182, %186 : vector<16x128xi1>, vector<16x128xf32>
    %cst_35 = arith.constant 5.000000e-01 : f32
    %188 = vector.broadcast %cst_35 : f32 to vector<16x128xf32>
    %189 = arith.mulf %188, %152 : vector<16x128xf32>
    %cst_36 = arith.constant 1.000000e+00 : f32
    %190 = vector.broadcast %cst_36 : f32 to vector<16x128xf32>
    %191 = arith.addf %190, %187 : vector<16x128xf32>
    %192 = arith.mulf %189, %191 : vector<16x128xf32>
    %c0_37 = arith.constant 0 : index
    %c0_38 = arith.constant 0 : index
    %c0_39 = arith.constant 0 : index
    %193 = vector.load %arg7[%c0_37, %c0_38, %c0_39] : memref<1x16x128xf32, #tpu.memory_space<vmem>>, vector<1x16x128xf32>
    %194 = vector.shape_cast %193 : vector<1x16x128xf32> to vector<16x128xf32>
    %195 = vector.shape_cast %192 : vector<16x128xf32> to vector<1x16x128xf32>
    tpu.vector_store %arg7[%c0_37, %c0_38, %c0_39], %195 {strides = array<i32>} : memref<1x16x128xf32, #tpu.memory_space<vmem>>, vector<1x16x128xf32>,
    %c0_40 = arith.constant 0 : index
    %c0_41 = arith.constant 0 : index
    %c0_42 = arith.constant 0 : index
    %c0_43 = arith.constant 0 : index
    %c0_44 = arith.constant 0 : index
    %196 = vector.load %arg3[%c0_40, %c0_41, %c0_42, %c0_43, %c0_44] : memref<1x1x2x8x16xf32, #tpu.memory_space<vmem>>, vector<1x1x1x8x16xf32>
    %197 = vector.shape_cast %196 : vector<1x1x1x8x16xf32> to vector<8x16xf32>
    %c0_45 = arith.constant 0 : index
    %c0_46 = arith.constant 0 : index
    %c1 = arith.constant 1 : index
    %c0_47 = arith.constant 0 : index
    %c0_48 = arith.constant 0 : index
    %198 = vector.load %arg3[%c0_45, %c0_46, %c1, %c0_47, %c0_48] : memref<1x1x2x8x16xf32, #tpu.memory_space<vmem>>, vector<1x1x1x8x16xf32>
    %199 = vector.shape_cast %198 : vector<1x1x1x8x16xf32> to vector<8x16xf32>
    %200 = vector.extract_strided_slice %1 {offsets = [0, 0], sizes = [8, 16], strides = [1, 1]} : vector<8x128xf32> to vector<8x16xf32>
    %201 = vector.extract_strided_slice %1 {offsets = [0, 112], sizes = [8, 16], strides = [1, 1]} : vector<8x128xf32> to vector<8x16xf32>
    %202 = vector.extract_strided_slice %1 {offsets = [0, 16], sizes = [8, 16], strides = [1, 1]} : vector<8x128xf32> to vector<8x16xf32>
    %203 = vector.extract_strided_slice %1 {offsets = [0, 96], sizes = [8, 16], strides = [1, 1]} : vector<8x128xf32> to vector<8x16xf32>
    %204 = vector.extract_strided_slice %2 {offsets = [4, 0, 0], sizes = [1, 8, 1], strides = [1, 1, 1]} : vector<9x8x1xf32> to vector<1x8x1xf32>
    %205 = vector.shape_cast %204 : vector<1x8x1xf32> to vector<8x1xf32>
    %206 = vector.broadcast %205 : vector<8x1xf32> to vector<8x16xf32>
    %207 = arith.mulf %200, %206 : vector<8x16xf32>
    %cst_49 = arith.constant 0.000000e+00 : f32
    %208 = vector.broadcast %cst_49 : f32 to vector<8x1xf32>
    %209 = vector.extract_strided_slice %197 {offsets = [0, 0], sizes = [8, 15], strides = [1, 1]} : vector<8x16xf32> to vector<8x15xf32>
    %210 = tpu.concatenate %208, %209 in 1 : vector<8x1xf32>, vector<8x15xf32> -> vector<8x16xf32>
    %211 = vector.extract_strided_slice %2 {offsets = [0, 0, 0], sizes = [1, 8, 1], strides = [1, 1, 1]} : vector<9x8x1xf32> to vector<1x8x1xf32>
    %212 = vector.shape_cast %211 : vector<1x8x1xf32> to vector<8x1xf32>
    %213 = vector.broadcast %212 : vector<8x1xf32> to vector<8x16xf32>
    %214 = arith.mulf %210, %213 : vector<8x16xf32>
    %215 = arith.addf %207, %214 : vector<8x16xf32>
    %216 = vector.extract_strided_slice %2 {offsets = [1, 0, 0], sizes = [1, 8, 1], strides = [1, 1, 1]} : vector<9x8x1xf32> to vector<1x8x1xf32>
    %217 = vector.shape_cast %216 : vector<1x8x1xf32> to vector<8x1xf32>
    %218 = vector.broadcast %217 : vector<8x1xf32> to vector<8x16xf32>
    %219 = arith.mulf %197, %218 : vector<8x16xf32>
    %220 = arith.addf %215, %219 : vector<8x16xf32>
    %cst_50 = arith.constant 0.000000e+00 : f32
    %221 = vector.broadcast %cst_50 : f32 to vector<8x1xf32>
    %222 = vector.extract_strided_slice %197 {offsets = [0, 1], sizes = [8, 15], strides = [1, 1]} : vector<8x16xf32> to vector<8x15xf32>
    %223 = tpu.concatenate %222, %221 in 1 : vector<8x15xf32>, vector<8x1xf32> -> vector<8x16xf32>
    %224 = vector.extract_strided_slice %2 {offsets = [2, 0, 0], sizes = [1, 8, 1], strides = [1, 1, 1]} : vector<9x8x1xf32> to vector<1x8x1xf32>
    %225 = vector.shape_cast %224 : vector<1x8x1xf32> to vector<8x1xf32>
    %226 = vector.broadcast %225 : vector<8x1xf32> to vector<8x16xf32>
    %227 = arith.mulf %223, %226 : vector<8x16xf32>
    %228 = arith.addf %220, %227 : vector<8x16xf32>
    %cst_51 = arith.constant 0.000000e+00 : f32
    %229 = vector.broadcast %cst_51 : f32 to vector<8x1xf32>
    %230 = vector.extract_strided_slice %200 {offsets = [0, 0], sizes = [8, 15], strides = [1, 1]} : vector<8x16xf32> to vector<8x15xf32>
    %231 = tpu.concatenate %229, %230 in 1 : vector<8x1xf32>, vector<8x15xf32> -> vector<8x16xf32>
    %232 = vector.extract_strided_slice %2 {offsets = [3, 0, 0], sizes = [1, 8, 1], strides = [1, 1, 1]} : vector<9x8x1xf32> to vector<1x8x1xf32>
    %233 = vector.shape_cast %232 : vector<1x8x1xf32> to vector<8x1xf32>
    %234 = vector.broadcast %233 : vector<8x1xf32> to vector<8x16xf32>
    %235 = arith.mulf %231, %234 : vector<8x16xf32>
    %236 = arith.addf %228, %235 : vector<8x16xf32>
    %cst_52 = arith.constant 0.000000e+00 : f32
    %237 = vector.broadcast %cst_52 : f32 to vector<8x1xf32>
    %238 = vector.extract_strided_slice %200 {offsets = [0, 1], sizes = [8, 15], strides = [1, 1]} : vector<8x16xf32> to vector<8x15xf32>
    %239 = tpu.concatenate %238, %237 in 1 : vector<8x15xf32>, vector<8x1xf32> -> vector<8x16xf32>
    %240 = vector.extract_strided_slice %2 {offsets = [5, 0, 0], sizes = [1, 8, 1], strides = [1, 1, 1]} : vector<9x8x1xf32> to vector<1x8x1xf32>
    %241 = vector.shape_cast %240 : vector<1x8x1xf32> to vector<8x1xf32>
    %242 = vector.broadcast %241 : vector<8x1xf32> to vector<8x16xf32>
    %243 = arith.mulf %239, %242 : vector<8x16xf32>
    %244 = arith.addf %236, %243 : vector<8x16xf32>
    %cst_53 = arith.constant 0.000000e+00 : f32
    %245 = vector.broadcast %cst_53 : f32 to vector<8x1xf32>
    %246 = vector.extract_strided_slice %202 {offsets = [0, 0], sizes = [8, 15], strides = [1, 1]} : vector<8x16xf32> to vector<8x15xf32>
    %247 = tpu.concatenate %245, %246 in 1 : vector<8x1xf32>, vector<8x15xf32> -> vector<8x16xf32>
    %248 = vector.extract_strided_slice %2 {offsets = [6, 0, 0], sizes = [1, 8, 1], strides = [1, 1, 1]} : vector<9x8x1xf32> to vector<1x8x1xf32>
    %249 = vector.shape_cast %248 : vector<1x8x1xf32> to vector<8x1xf32>
    %250 = vector.broadcast %249 : vector<8x1xf32> to vector<8x16xf32>
    %251 = arith.mulf %247, %250 : vector<8x16xf32>
    %252 = arith.addf %244, %251 : vector<8x16xf32>
    %253 = vector.extract_strided_slice %2 {offsets = [7, 0, 0], sizes = [1, 8, 1], strides = [1, 1, 1]} : vector<9x8x1xf32> to vector<1x8x1xf32>
    %254 = vector.shape_cast %253 : vector<1x8x1xf32> to vector<8x1xf32>
    %255 = vector.broadcast %254 : vector<8x1xf32> to vector<8x16xf32>
    %256 = arith.mulf %202, %255 : vector<8x16xf32>
    %257 = arith.addf %252, %256 : vector<8x16xf32>
    %cst_54 = arith.constant 0.000000e+00 : f32
    %258 = vector.broadcast %cst_54 : f32 to vector<8x1xf32>
    %259 = vector.extract_strided_slice %202 {offsets = [0, 1], sizes = [8, 15], strides = [1, 1]} : vector<8x16xf32> to vector<8x15xf32>
    %260 = tpu.concatenate %259, %258 in 1 : vector<8x15xf32>, vector<8x1xf32> -> vector<8x16xf32>
    %261 = vector.extract_strided_slice %2 {offsets = [8, 0, 0], sizes = [1, 8, 1], strides = [1, 1, 1]} : vector<9x8x1xf32> to vector<1x8x1xf32>
    %262 = vector.shape_cast %261 : vector<1x8x1xf32> to vector<8x1xf32>
    %263 = vector.broadcast %262 : vector<8x1xf32> to vector<8x16xf32>
    %264 = arith.mulf %260, %263 : vector<8x16xf32>
    %265 = arith.addf %257, %264 : vector<8x16xf32>
    %266 = vector.broadcast %3 : vector<8x1xf32> to vector<8x16xf32>
    %267 = arith.addf %265, %266 : vector<8x16xf32>
    %268 = vector.extract_strided_slice %267 {offsets = [0, 0], sizes = [4, 16], strides = [1, 1]} : vector<8x16xf32> to vector<4x16xf32>
    %269 = vector.extract_strided_slice %4 {offsets = [0, 0, 0], sizes = [1, 8, 1], strides = [1, 1, 1]} : vector<4x8x1xf32> to vector<1x8x1xf32>
    %270 = vector.shape_cast %269 : vector<1x8x1xf32> to vector<8x1xf32>
    %271 = vector.extract_strided_slice %268 {offsets = [0, 0], sizes = [1, 16], strides = [1, 1]} : vector<4x16xf32> to vector<1x16xf32>
    %272 = vector.broadcast %270 : vector<8x1xf32> to vector<8x16xf32>
    %273 = vector.broadcast %271 : vector<1x16xf32> to vector<8x16xf32>
    %274 = arith.mulf %272, %273 : vector<8x16xf32>
    %275 = vector.extract_strided_slice %4 {offsets = [1, 0, 0], sizes = [1, 8, 1], strides = [1, 1, 1]} : vector<4x8x1xf32> to vector<1x8x1xf32>
    %276 = vector.shape_cast %275 : vector<1x8x1xf32> to vector<8x1xf32>
    %277 = vector.extract_strided_slice %268 {offsets = [1, 0], sizes = [1, 16], strides = [1, 1]} : vector<4x16xf32> to vector<1x16xf32>
    %278 = vector.broadcast %276 : vector<8x1xf32> to vector<8x16xf32>
    %279 = vector.broadcast %277 : vector<1x16xf32> to vector<8x16xf32>
    %280 = arith.mulf %278, %279 : vector<8x16xf32>
    %281 = arith.addf %274, %280 : vector<8x16xf32>
    %282 = vector.extract_strided_slice %4 {offsets = [2, 0, 0], sizes = [1, 8, 1], strides = [1, 1, 1]} : vector<4x8x1xf32> to vector<1x8x1xf32>
    %283 = vector.shape_cast %282 : vector<1x8x1xf32> to vector<8x1xf32>
    %284 = vector.extract_strided_slice %268 {offsets = [2, 0], sizes = [1, 16], strides = [1, 1]} : vector<4x16xf32> to vector<1x16xf32>
    %285 = vector.broadcast %283 : vector<8x1xf32> to vector<8x16xf32>
    %286 = vector.broadcast %284 : vector<1x16xf32> to vector<8x16xf32>
    %287 = arith.mulf %285, %286 : vector<8x16xf32>
    %288 = arith.addf %281, %287 : vector<8x16xf32>
    %289 = vector.extract_strided_slice %4 {offsets = [3, 0, 0], sizes = [1, 8, 1], strides = [1, 1, 1]} : vector<4x8x1xf32> to vector<1x8x1xf32>
    %290 = vector.shape_cast %289 : vector<1x8x1xf32> to vector<8x1xf32>
    %291 = vector.extract_strided_slice %268 {offsets = [3, 0], sizes = [1, 16], strides = [1, 1]} : vector<4x16xf32> to vector<1x16xf32>
    %292 = vector.broadcast %290 : vector<8x1xf32> to vector<8x16xf32>
    %293 = vector.broadcast %291 : vector<1x16xf32> to vector<8x16xf32>
    %294 = arith.mulf %292, %293 : vector<8x16xf32>
    %295 = arith.addf %288, %294 : vector<8x16xf32>
    %296 = vector.extract_strided_slice %267 {offsets = [4, 0], sizes = [4, 16], strides = [1, 1]} : vector<8x16xf32> to vector<4x16xf32>
    %297 = vector.extract_strided_slice %4 {offsets = [0, 0, 0], sizes = [1, 8, 1], strides = [1, 1, 1]} : vector<4x8x1xf32> to vector<1x8x1xf32>
    %298 = vector.shape_cast %297 : vector<1x8x1xf32> to vector<8x1xf32>
    %299 = vector.extract_strided_slice %296 {offsets = [0, 0], sizes = [1, 16], strides = [1, 1]} : vector<4x16xf32> to vector<1x16xf32>
    %300 = vector.broadcast %298 : vector<8x1xf32> to vector<8x16xf32>
    %301 = vector.broadcast %299 : vector<1x16xf32> to vector<8x16xf32>
    %302 = arith.mulf %300, %301 : vector<8x16xf32>
    %303 = vector.extract_strided_slice %4 {offsets = [1, 0, 0], sizes = [1, 8, 1], strides = [1, 1, 1]} : vector<4x8x1xf32> to vector<1x8x1xf32>
    %304 = vector.shape_cast %303 : vector<1x8x1xf32> to vector<8x1xf32>
    %305 = vector.extract_strided_slice %296 {offsets = [1, 0], sizes = [1, 16], strides = [1, 1]} : vector<4x16xf32> to vector<1x16xf32>
    %306 = vector.broadcast %304 : vector<8x1xf32> to vector<8x16xf32>
    %307 = vector.broadcast %305 : vector<1x16xf32> to vector<8x16xf32>
    %308 = arith.mulf %306, %307 : vector<8x16xf32>
    %309 = arith.addf %302, %308 : vector<8x16xf32>
    %310 = vector.extract_strided_slice %4 {offsets = [2, 0, 0], sizes = [1, 8, 1], strides = [1, 1, 1]} : vector<4x8x1xf32> to vector<1x8x1xf32>
    %311 = vector.shape_cast %310 : vector<1x8x1xf32> to vector<8x1xf32>
    %312 = vector.extract_strided_slice %296 {offsets = [2, 0], sizes = [1, 16], strides = [1, 1]} : vector<4x16xf32> to vector<1x16xf32>
    %313 = vector.broadcast %311 : vector<8x1xf32> to vector<8x16xf32>
    %314 = vector.broadcast %312 : vector<1x16xf32> to vector<8x16xf32>
    %315 = arith.mulf %313, %314 : vector<8x16xf32>
    %316 = arith.addf %309, %315 : vector<8x16xf32>
    %317 = vector.extract_strided_slice %4 {offsets = [3, 0, 0], sizes = [1, 8, 1], strides = [1, 1, 1]} : vector<4x8x1xf32> to vector<1x8x1xf32>
    %318 = vector.shape_cast %317 : vector<1x8x1xf32> to vector<8x1xf32>
    %319 = vector.extract_strided_slice %296 {offsets = [3, 0], sizes = [1, 16], strides = [1, 1]} : vector<4x16xf32> to vector<1x16xf32>
    %320 = vector.broadcast %318 : vector<8x1xf32> to vector<8x16xf32>
    %321 = vector.broadcast %319 : vector<1x16xf32> to vector<8x16xf32>
    %322 = arith.mulf %320, %321 : vector<8x16xf32>
    %323 = arith.addf %316, %322 : vector<8x16xf32>
    %324 = tpu.concatenate %295, %323 in 0 : vector<8x16xf32>, vector<8x16xf32> -> vector<16x16xf32>
    %cst_55 = arith.constant 0.707106769 : f32
    %325 = vector.broadcast %cst_55 : f32 to vector<16x16xf32>
    %326 = arith.mulf %324, %325 : vector<16x16xf32>
    %327 = math.absf %326 : vector<16x16xf32>
    %cst_56 = arith.constant 0.327591091 : f32
    %328 = vector.broadcast %cst_56 : f32 to vector<16x16xf32>
    %329 = arith.mulf %328, %327 : vector<16x16xf32>
    %cst_57 = arith.constant 1.000000e+00 : f32
    %330 = vector.broadcast %cst_57 : f32 to vector<16x16xf32>
    %331 = arith.addf %330, %329 : vector<16x16xf32>
    %cst_58 = arith.constant 1.000000e+00 : f32
    %332 = vector.broadcast %cst_58 : f32 to vector<16x16xf32>
    %333 = arith.divf %332, %331 : vector<16x16xf32>
    %cst_59 = arith.constant 1.06140542 : f32
    %334 = vector.broadcast %cst_59 : f32 to vector<16x16xf32>
    %335 = arith.mulf %334, %333 : vector<16x16xf32>
    %cst_60 = arith.constant 1.45315206 : f32
    %336 = vector.broadcast %cst_60 : f32 to vector<16x16xf32>
    %337 = arith.subf %335, %336 : vector<16x16xf32>
    %338 = arith.mulf %337, %333 : vector<16x16xf32>
    %cst_61 = arith.constant 1.42141378 : f32
    %339 = vector.broadcast %cst_61 : f32 to vector<16x16xf32>
    %340 = arith.addf %338, %339 : vector<16x16xf32>
    %341 = arith.mulf %340, %333 : vector<16x16xf32>
    %cst_62 = arith.constant 0.284496725 : f32
    %342 = vector.broadcast %cst_62 : f32 to vector<16x16xf32>
    %343 = arith.subf %341, %342 : vector<16x16xf32>
    %344 = arith.mulf %343, %333 : vector<16x16xf32>
    %cst_63 = arith.constant 0.254829586 : f32
    %345 = vector.broadcast %cst_63 : f32 to vector<16x16xf32>
    %346 = arith.addf %344, %345 : vector<16x16xf32>
    %347 = arith.mulf %346, %333 : vector<16x16xf32>
    %cst_64 = arith.constant 0.000000e+00 : f32
    %348 = vector.broadcast %cst_64 : f32 to vector<16x16xf32>
    %349 = arith.subf %348, %327 : vector<16x16xf32>
    %350 = arith.mulf %349, %327 : vector<16x16xf32>
    %351 = math.exp %350 : vector<16x16xf32>
    %352 = arith.mulf %347, %351 : vector<16x16xf32>
    %cst_65 = arith.constant 1.000000e+00 : f32
    %353 = vector.broadcast %cst_65 : f32 to vector<16x16xf32>
    %354 = arith.subf %353, %352 : vector<16x16xf32>
    %cst_66 = arith.constant 0.000000e+00 : f32
    %355 = vector.broadcast %cst_66 : f32 to vector<16x16xf32>
    %356 = arith.cmpf oge, %326, %355 : vector<16x16xf32>
    %cst_67 = arith.constant 0.000000e+00 : f32
    %357 = vector.broadcast %cst_67 : f32 to vector<16x16xf32>
    %358 = arith.subf %357, %354 : vector<16x16xf32>
    %359 = arith.select %356, %354, %358 : vector<16x16xi1>, vector<16x16xf32>
    %cst_68 = arith.constant 5.000000e-01 : f32
    %360 = vector.broadcast %cst_68 : f32 to vector<16x16xf32>
    %361 = arith.mulf %360, %324 : vector<16x16xf32>
    %cst_69 = arith.constant 1.000000e+00 : f32
    %362 = vector.broadcast %cst_69 : f32 to vector<16x16xf32>
    %363 = arith.addf %362, %359 : vector<16x16xf32>
    %364 = arith.mulf %361, %363 : vector<16x16xf32>
    %365 = vector.extract_strided_slice %2 {offsets = [4, 0, 0], sizes = [1, 8, 1], strides = [1, 1, 1]} : vector<9x8x1xf32> to vector<1x8x1xf32>
    %366 = vector.shape_cast %365 : vector<1x8x1xf32> to vector<8x1xf32>
    %367 = vector.broadcast %366 : vector<8x1xf32> to vector<8x16xf32>
    %368 = arith.mulf %201, %367 : vector<8x16xf32>
    %cst_70 = arith.constant 0.000000e+00 : f32
    %369 = vector.broadcast %cst_70 : f32 to vector<8x1xf32>
    %370 = vector.extract_strided_slice %203 {offsets = [0, 0], sizes = [8, 15], strides = [1, 1]} : vector<8x16xf32> to vector<8x15xf32>
    %371 = tpu.concatenate %369, %370 in 1 : vector<8x1xf32>, vector<8x15xf32> -> vector<8x16xf32>
    %372 = vector.extract_strided_slice %2 {offsets = [0, 0, 0], sizes = [1, 8, 1], strides = [1, 1, 1]} : vector<9x8x1xf32> to vector<1x8x1xf32>
    %373 = vector.shape_cast %372 : vector<1x8x1xf32> to vector<8x1xf32>
    %374 = vector.broadcast %373 : vector<8x1xf32> to vector<8x16xf32>
    %375 = arith.mulf %371, %374 : vector<8x16xf32>
    %376 = arith.addf %368, %375 : vector<8x16xf32>
    %377 = vector.extract_strided_slice %2 {offsets = [1, 0, 0], sizes = [1, 8, 1], strides = [1, 1, 1]} : vector<9x8x1xf32> to vector<1x8x1xf32>
    %378 = vector.shape_cast %377 : vector<1x8x1xf32> to vector<8x1xf32>
    %379 = vector.broadcast %378 : vector<8x1xf32> to vector<8x16xf32>
    %380 = arith.mulf %203, %379 : vector<8x16xf32>
    %381 = arith.addf %376, %380 : vector<8x16xf32>
    %cst_71 = arith.constant 0.000000e+00 : f32
    %382 = vector.broadcast %cst_71 : f32 to vector<8x1xf32>
    %383 = vector.extract_strided_slice %203 {offsets = [0, 1], sizes = [8, 15], strides = [1, 1]} : vector<8x16xf32> to vector<8x15xf32>
    %384 = tpu.concatenate %383, %382 in 1 : vector<8x15xf32>, vector<8x1xf32> -> vector<8x16xf32>
    %385 = vector.extract_strided_slice %2 {offsets = [2, 0, 0], sizes = [1, 8, 1], strides = [1, 1, 1]} : vector<9x8x1xf32> to vector<1x8x1xf32>
    %386 = vector.shape_cast %385 : vector<1x8x1xf32> to vector<8x1xf32>
    %387 = vector.broadcast %386 : vector<8x1xf32> to vector<8x16xf32>
    %388 = arith.mulf %384, %387 : vector<8x16xf32>
    %389 = arith.addf %381, %388 : vector<8x16xf32>
    %cst_72 = arith.constant 0.000000e+00 : f32
    %390 = vector.broadcast %cst_72 : f32 to vector<8x1xf32>
    %391 = vector.extract_strided_slice %201 {offsets = [0, 0], sizes = [8, 15], strides = [1, 1]} : vector<8x16xf32> to vector<8x15xf32>
    %392 = tpu.concatenate %390, %391 in 1 : vector<8x1xf32>, vector<8x15xf32> -> vector<8x16xf32>
    %393 = vector.extract_strided_slice %2 {offsets = [3, 0, 0], sizes = [1, 8, 1], strides = [1, 1, 1]} : vector<9x8x1xf32> to vector<1x8x1xf32>
    %394 = vector.shape_cast %393 : vector<1x8x1xf32> to vector<8x1xf32>
    %395 = vector.broadcast %394 : vector<8x1xf32> to vector<8x16xf32>
    %396 = arith.mulf %392, %395 : vector<8x16xf32>
    %397 = arith.addf %389, %396 : vector<8x16xf32>
    %cst_73 = arith.constant 0.000000e+00 : f32
    %398 = vector.broadcast %cst_73 : f32 to vector<8x1xf32>
    %399 = vector.extract_strided_slice %201 {offsets = [0, 1], sizes = [8, 15], strides = [1, 1]} : vector<8x16xf32> to vector<8x15xf32>
    %400 = tpu.concatenate %399, %398 in 1 : vector<8x15xf32>, vector<8x1xf32> -> vector<8x16xf32>
    %401 = vector.extract_strided_slice %2 {offsets = [5, 0, 0], sizes = [1, 8, 1], strides = [1, 1, 1]} : vector<9x8x1xf32> to vector<1x8x1xf32>
    %402 = vector.shape_cast %401 : vector<1x8x1xf32> to vector<8x1xf32>
    %403 = vector.broadcast %402 : vector<8x1xf32> to vector<8x16xf32>
    %404 = arith.mulf %400, %403 : vector<8x16xf32>
    %405 = arith.addf %397, %404 : vector<8x16xf32>
    %cst_74 = arith.constant 0.000000e+00 : f32
    %406 = vector.broadcast %cst_74 : f32 to vector<8x1xf32>
    %407 = vector.extract_strided_slice %199 {offsets = [0, 0], sizes = [8, 15], strides = [1, 1]} : vector<8x16xf32> to vector<8x15xf32>
    %408 = tpu.concatenate %406, %407 in 1 : vector<8x1xf32>, vector<8x15xf32> -> vector<8x16xf32>
    %409 = vector.extract_strided_slice %2 {offsets = [6, 0, 0], sizes = [1, 8, 1], strides = [1, 1, 1]} : vector<9x8x1xf32> to vector<1x8x1xf32>
    %410 = vector.shape_cast %409 : vector<1x8x1xf32> to vector<8x1xf32>
    %411 = vector.broadcast %410 : vector<8x1xf32> to vector<8x16xf32>
    %412 = arith.mulf %408, %411 : vector<8x16xf32>
    %413 = arith.addf %405, %412 : vector<8x16xf32>
    %414 = vector.extract_strided_slice %2 {offsets = [7, 0, 0], sizes = [1, 8, 1], strides = [1, 1, 1]} : vector<9x8x1xf32> to vector<1x8x1xf32>
    %415 = vector.shape_cast %414 : vector<1x8x1xf32> to vector<8x1xf32>
    %416 = vector.broadcast %415 : vector<8x1xf32> to vector<8x16xf32>
    %417 = arith.mulf %199, %416 : vector<8x16xf32>
    %418 = arith.addf %413, %417 : vector<8x16xf32>
    %cst_75 = arith.constant 0.000000e+00 : f32
    %419 = vector.broadcast %cst_75 : f32 to vector<8x1xf32>
    %420 = vector.extract_strided_slice %199 {offsets = [0, 1], sizes = [8, 15], strides = [1, 1]} : vector<8x16xf32> to vector<8x15xf32>
    %421 = tpu.concatenate %420, %419 in 1 : vector<8x15xf32>, vector<8x1xf32> -> vector<8x16xf32>
    %422 = vector.extract_strided_slice %2 {offsets = [8, 0, 0], sizes = [1, 8, 1], strides = [1, 1, 1]} : vector<9x8x1xf32> to vector<1x8x1xf32>
    %423 = vector.shape_cast %422 : vector<1x8x1xf32> to vector<8x1xf32>
    %424 = vector.broadcast %423 : vector<8x1xf32> to vector<8x16xf32>
    %425 = arith.mulf %421, %424 : vector<8x16xf32>
    %426 = arith.addf %418, %425 : vector<8x16xf32>
    %427 = vector.broadcast %3 : vector<8x1xf32> to vector<8x16xf32>
    %428 = arith.addf %426, %427 : vector<8x16xf32>
    %429 = vector.extract_strided_slice %428 {offsets = [0, 0], sizes = [4, 16], strides = [1, 1]} : vector<8x16xf32> to vector<4x16xf32>
    %430 = vector.extract_strided_slice %4 {offsets = [0, 0, 0], sizes = [1, 8, 1], strides = [1, 1, 1]} : vector<4x8x1xf32> to vector<1x8x1xf32>
    %431 = vector.shape_cast %430 : vector<1x8x1xf32> to vector<8x1xf32>
    %432 = vector.extract_strided_slice %429 {offsets = [0, 0], sizes = [1, 16], strides = [1, 1]} : vector<4x16xf32> to vector<1x16xf32>
    %433 = vector.broadcast %431 : vector<8x1xf32> to vector<8x16xf32>
    %434 = vector.broadcast %432 : vector<1x16xf32> to vector<8x16xf32>
    %435 = arith.mulf %433, %434 : vector<8x16xf32>
    %436 = vector.extract_strided_slice %4 {offsets = [1, 0, 0], sizes = [1, 8, 1], strides = [1, 1, 1]} : vector<4x8x1xf32> to vector<1x8x1xf32>
    %437 = vector.shape_cast %436 : vector<1x8x1xf32> to vector<8x1xf32>
    %438 = vector.extract_strided_slice %429 {offsets = [1, 0], sizes = [1, 16], strides = [1, 1]} : vector<4x16xf32> to vector<1x16xf32>
    %439 = vector.broadcast %437 : vector<8x1xf32> to vector<8x16xf32>
    %440 = vector.broadcast %438 : vector<1x16xf32> to vector<8x16xf32>
    %441 = arith.mulf %439, %440 : vector<8x16xf32>
    %442 = arith.addf %435, %441 : vector<8x16xf32>
    %443 = vector.extract_strided_slice %4 {offsets = [2, 0, 0], sizes = [1, 8, 1], strides = [1, 1, 1]} : vector<4x8x1xf32> to vector<1x8x1xf32>
    %444 = vector.shape_cast %443 : vector<1x8x1xf32> to vector<8x1xf32>
    %445 = vector.extract_strided_slice %429 {offsets = [2, 0], sizes = [1, 16], strides = [1, 1]} : vector<4x16xf32> to vector<1x16xf32>
    %446 = vector.broadcast %444 : vector<8x1xf32> to vector<8x16xf32>
    %447 = vector.broadcast %445 : vector<1x16xf32> to vector<8x16xf32>
    %448 = arith.mulf %446, %447 : vector<8x16xf32>
    %449 = arith.addf %442, %448 : vector<8x16xf32>
    %450 = vector.extract_strided_slice %4 {offsets = [3, 0, 0], sizes = [1, 8, 1], strides = [1, 1, 1]} : vector<4x8x1xf32> to vector<1x8x1xf32>
    %451 = vector.shape_cast %450 : vector<1x8x1xf32> to vector<8x1xf32>
    %452 = vector.extract_strided_slice %429 {offsets = [3, 0], sizes = [1, 16], strides = [1, 1]} : vector<4x16xf32> to vector<1x16xf32>
    %453 = vector.broadcast %451 : vector<8x1xf32> to vector<8x16xf32>
    %454 = vector.broadcast %452 : vector<1x16xf32> to vector<8x16xf32>
    %455 = arith.mulf %453, %454 : vector<8x16xf32>
    %456 = arith.addf %449, %455 : vector<8x16xf32>
    %457 = vector.extract_strided_slice %428 {offsets = [4, 0], sizes = [4, 16], strides = [1, 1]} : vector<8x16xf32> to vector<4x16xf32>
    %458 = vector.extract_strided_slice %4 {offsets = [0, 0, 0], sizes = [1, 8, 1], strides = [1, 1, 1]} : vector<4x8x1xf32> to vector<1x8x1xf32>
    %459 = vector.shape_cast %458 : vector<1x8x1xf32> to vector<8x1xf32>
    %460 = vector.extract_strided_slice %457 {offsets = [0, 0], sizes = [1, 16], strides = [1, 1]} : vector<4x16xf32> to vector<1x16xf32>
    %461 = vector.broadcast %459 : vector<8x1xf32> to vector<8x16xf32>
    %462 = vector.broadcast %460 : vector<1x16xf32> to vector<8x16xf32>
    %463 = arith.mulf %461, %462 : vector<8x16xf32>
    %464 = vector.extract_strided_slice %4 {offsets = [1, 0, 0], sizes = [1, 8, 1], strides = [1, 1, 1]} : vector<4x8x1xf32> to vector<1x8x1xf32>
    %465 = vector.shape_cast %464 : vector<1x8x1xf32> to vector<8x1xf32>
    %466 = vector.extract_strided_slice %457 {offsets = [1, 0], sizes = [1, 16], strides = [1, 1]} : vector<4x16xf32> to vector<1x16xf32>
    %467 = vector.broadcast %465 : vector<8x1xf32> to vector<8x16xf32>
    %468 = vector.broadcast %466 : vector<1x16xf32> to vector<8x16xf32>
    %469 = arith.mulf %467, %468 : vector<8x16xf32>
    %470 = arith.addf %463, %469 : vector<8x16xf32>
    %471 = vector.extract_strided_slice %4 {offsets = [2, 0, 0], sizes = [1, 8, 1], strides = [1, 1, 1]} : vector<4x8x1xf32> to vector<1x8x1xf32>
    %472 = vector.shape_cast %471 : vector<1x8x1xf32> to vector<8x1xf32>
    %473 = vector.extract_strided_slice %457 {offsets = [2, 0], sizes = [1, 16], strides = [1, 1]} : vector<4x16xf32> to vector<1x16xf32>
    %474 = vector.broadcast %472 : vector<8x1xf32> to vector<8x16xf32>
    %475 = vector.broadcast %473 : vector<1x16xf32> to vector<8x16xf32>
    %476 = arith.mulf %474, %475 : vector<8x16xf32>
    %477 = arith.addf %470, %476 : vector<8x16xf32>
    %478 = vector.extract_strided_slice %4 {offsets = [3, 0, 0], sizes = [1, 8, 1], strides = [1, 1, 1]} : vector<4x8x1xf32> to vector<1x8x1xf32>
    %479 = vector.shape_cast %478 : vector<1x8x1xf32> to vector<8x1xf32>
    %480 = vector.extract_strided_slice %457 {offsets = [3, 0], sizes = [1, 16], strides = [1, 1]} : vector<4x16xf32> to vector<1x16xf32>
    %481 = vector.broadcast %479 : vector<8x1xf32> to vector<8x16xf32>
    %482 = vector.broadcast %480 : vector<1x16xf32> to vector<8x16xf32>
    %483 = arith.mulf %481, %482 : vector<8x16xf32>
    %484 = arith.addf %477, %483 : vector<8x16xf32>
    %485 = tpu.concatenate %456, %484 in 0 : vector<8x16xf32>, vector<8x16xf32> -> vector<16x16xf32>
    %cst_76 = arith.constant 0.707106769 : f32
    %486 = vector.broadcast %cst_76 : f32 to vector<16x16xf32>
    %487 = arith.mulf %485, %486 : vector<16x16xf32>
    %488 = math.absf %487 : vector<16x16xf32>
    %cst_77 = arith.constant 0.327591091 : f32
    %489 = vector.broadcast %cst_77 : f32 to vector<16x16xf32>
    %490 = arith.mulf %489, %488 : vector<16x16xf32>
    %cst_78 = arith.constant 1.000000e+00 : f32
    %491 = vector.broadcast %cst_78 : f32 to vector<16x16xf32>
    %492 = arith.addf %491, %490 : vector<16x16xf32>
    %cst_79 = arith.constant 1.000000e+00 : f32
    %493 = vector.broadcast %cst_79 : f32 to vector<16x16xf32>
    %494 = arith.divf %493, %492 : vector<16x16xf32>
    %cst_80 = arith.constant 1.06140542 : f32
    %495 = vector.broadcast %cst_80 : f32 to vector<16x16xf32>
    %496 = arith.mulf %495, %494 : vector<16x16xf32>
    %cst_81 = arith.constant 1.45315206 : f32
    %497 = vector.broadcast %cst_81 : f32 to vector<16x16xf32>
    %498 = arith.subf %496, %497 : vector<16x16xf32>
    %499 = arith.mulf %498, %494 : vector<16x16xf32>
    %cst_82 = arith.constant 1.42141378 : f32
    %500 = vector.broadcast %cst_82 : f32 to vector<16x16xf32>
    %501 = arith.addf %499, %500 : vector<16x16xf32>
    %502 = arith.mulf %501, %494 : vector<16x16xf32>
    %cst_83 = arith.constant 0.284496725 : f32
    %503 = vector.broadcast %cst_83 : f32 to vector<16x16xf32>
    %504 = arith.subf %502, %503 : vector<16x16xf32>
    %505 = arith.mulf %504, %494 : vector<16x16xf32>
    %cst_84 = arith.constant 0.254829586 : f32
    %506 = vector.broadcast %cst_84 : f32 to vector<16x16xf32>
    %507 = arith.addf %505, %506 : vector<16x16xf32>
    %508 = arith.mulf %507, %494 : vector<16x16xf32>
    %cst_85 = arith.constant 0.000000e+00 : f32
    %509 = vector.broadcast %cst_85 : f32 to vector<16x16xf32>
    %510 = arith.subf %509, %488 : vector<16x16xf32>
    %511 = arith.mulf %510, %488 : vector<16x16xf32>
    %512 = math.exp %511 : vector<16x16xf32>
    %513 = arith.mulf %508, %512 : vector<16x16xf32>
    %cst_86 = arith.constant 1.000000e+00 : f32
    %514 = vector.broadcast %cst_86 : f32 to vector<16x16xf32>
    %515 = arith.subf %514, %513 : vector<16x16xf32>
    %cst_87 = arith.constant 0.000000e+00 : f32
    %516 = vector.broadcast %cst_87 : f32 to vector<16x16xf32>
    %517 = arith.cmpf oge, %487, %516 : vector<16x16xf32>
    %cst_88 = arith.constant 0.000000e+00 : f32
    %518 = vector.broadcast %cst_88 : f32 to vector<16x16xf32>
    %519 = arith.subf %518, %515 : vector<16x16xf32>
    %520 = arith.select %517, %515, %519 : vector<16x16xi1>, vector<16x16xf32>
    %cst_89 = arith.constant 5.000000e-01 : f32
    %521 = vector.broadcast %cst_89 : f32 to vector<16x16xf32>
    %522 = arith.mulf %521, %485 : vector<16x16xf32>
    %cst_90 = arith.constant 1.000000e+00 : f32
    %523 = vector.broadcast %cst_90 : f32 to vector<16x16xf32>
    %524 = arith.addf %523, %520 : vector<16x16xf32>
    %525 = arith.mulf %522, %524 : vector<16x16xf32>
    %c0_91 = arith.constant 0 : index
    %c0_92 = arith.constant 0 : index
    %c0_93 = arith.constant 0 : index
    %526 = vector.load %arg7[%c0_91, %c0_92, %c0_93] : memref<1x16x128xf32, #tpu.memory_space<vmem>>, vector<1x16x16xf32>
    %527 = vector.shape_cast %526 : vector<1x16x16xf32> to vector<16x16xf32>
    %528 = vector.shape_cast %364 : vector<16x16xf32> to vector<1x16x16xf32>
    tpu.vector_store %arg7[%c0_91, %c0_92, %c0_93], %528 {strides = array<i32>} : memref<1x16x128xf32, #tpu.memory_space<vmem>>, vector<1x16x16xf32>,
    %c0_94 = arith.constant 0 : index
    %c0_95 = arith.constant 0 : index
    %c112 = arith.constant 112 : index
    %529 = vector.load %arg7[%c0_94, %c0_95, %c112] : memref<1x16x128xf32, #tpu.memory_space<vmem>>, vector<1x16x16xf32>
    %530 = vector.shape_cast %529 : vector<1x16x16xf32> to vector<16x16xf32>
    %531 = vector.shape_cast %525 : vector<16x16xf32> to vector<1x16x16xf32>
    tpu.vector_store %arg7[%c0_94, %c0_95, %c112], %531 {strides = array<i32>} : memref<1x16x128xf32, #tpu.memory_space<vmem>>, vector<1x16x16xf32>,
    return
  }
  func.func @transform_0(%arg0: i32, %arg1: i32) -> (i32, i32, i32) {
    %c0_i32 = arith.constant 0 : i32
    %c0_i32_0 = arith.constant 0 : i32
    return %arg0, %c0_i32, %arg1 : i32, i32, i32
  }
  func.func @transform_1(%arg0: i32, %arg1: i32) -> (i32, i32, i32, i32, i32) {
    %c0_i32 = arith.constant 0 : i32
    %c0_i32_0 = arith.constant 0 : i32
    %c0_i32_1 = arith.constant 0 : i32
    %c0_i32_2 = arith.constant 0 : i32
    return %arg0, %arg1, %c0_i32, %c0_i32_0, %c0_i32_1 : i32, i32, i32, i32, i32
  }
  func.func @transform_2(%arg0: i32, %arg1: i32) -> (i32, i32, i32) {
    %c0_i32 = arith.constant 0 : i32
    %c0_i32_0 = arith.constant 0 : i32
    %c0_i32_1 = arith.constant 0 : i32
    %c0_i32_2 = arith.constant 0 : i32
    return %c0_i32, %c0_i32_0, %c0_i32_1 : i32, i32, i32
  }
  func.func @transform_3(%arg0: i32, %arg1: i32) -> (i32, i32) {
    %c0_i32 = arith.constant 0 : i32
    %c0_i32_0 = arith.constant 0 : i32
    %c0_i32_1 = arith.constant 0 : i32
    return %c0_i32, %c0_i32_0 : i32, i32
  }
  func.func @transform_4(%arg0: i32, %arg1: i32) -> (i32, i32, i32) {
    %c0_i32 = arith.constant 0 : i32
    %c0_i32_0 = arith.constant 0 : i32
    %c0_i32_1 = arith.constant 0 : i32
    %c0_i32_2 = arith.constant 0 : i32
    return %c0_i32, %c0_i32_0, %c0_i32_1 : i32, i32, i32
  }
  func.func @transform_5(%arg0: i32, %arg1: i32) -> (i32, i32, i32) {
    %c0_i32 = arith.constant 0 : i32
    %c0_i32_0 = arith.constant 0 : i32
    return %arg0, %c0_i32, %arg1 : i32, i32, i32
  }
}

</mosaic_0001>

<llo_original>
// kernel: tpu_custom_call.1
$region0: #{tpu_custom_call.1}
  #allocation0 [shape = 'u32[]', space=smem, size = 0x4, offset = 0x4, fixed_abs, tag = 'smem constant byte address 0x4 - core index']
  #allocation1 [shape = 'u32[72,128]{1,0:T(1,128)}', space=vmem, size = 0x9000, scoped, tag = 'internal scratch']
  %s0 = inlined_call_operand.vmem [shape: f32[1,8,256], index: 0, kind: input, shape index: {}]
  %s1 = inlined_call_operand.vmem [shape: f32[1,2,2,8,16], index: 1, kind: input, shape index: {}]
  %s2 = inlined_call_operand.vmem [shape: f32[9,8,1], index: 2, kind: input, shape index: {}]
  %s3 = inlined_call_operand.vmem [shape: f32[8,1], index: 3, kind: input, shape index: {}]
  %s4 = inlined_call_operand.vmem [shape: f32[4,8,1], index: 4, kind: input, shape index: {}]
  %s5 = inlined_call_operand.hbm [shape: f32[1,16,256], index: 5, kind: output, shape index: {}]
  %s6 = sld [smem:[#allocation0]]
  $region53: #{tpu_custom_call.1} parent=0
    _
  %s8 = ssub.s32 1, %s6
  %s9 = scalar_select 0, %s8, %s6
  $region1: #{tpu_custom_call.1} parent=0
    #allocation2 [shape = 'u8[16384]{0}', space=vmem, size = 0x4000, scoped, tag = 'output window, operand 0']
    #allocation3 [shape = 's32[2]{0}', space=sflag, size = 0x8, scoped, tag = 'scoped memory for tpu_custom_call.1']
    %10 = vsyncpa [#allocation3], 0
    %s11 = scalar_lea.sflag [#allocation3], 1
    %12 = vsyncpa %s11, 0
    loop: start=0, step=1, limit=4
    $region2: #{tpu_custom_call.1} parent=1 // loop_pre_header
      _
    $region3: #{tpu_custom_call.1} parent=1 // loop_header
      %s14 = sphi 0, %s18
      %p15 = scmp.ge.s32.totalorder %s14, 4
      %s21 = sphi 0, %s33
      %s22 = sphi 0, %s29
      %s23 = sphi 0, %s21
      %s24 = sphi 0, %s22
      %s25 = sphi 0, %s23
      %s26 = sphi 0, %s24
      %s38 = sphi 0, %s40
      %s41 = sphi 0, %s38
      %s42 = sphi 0, %s41
      %s58 = sphi 0, %s42
      %s66 = sphi 0, %s68
      %s69 = sphi 0, %s66
      %s70 = sphi 0, %s69
      %s86 = sphi 0, %s70
      %s90 = sphi 0, %s90
      %s92 = sphi 0, %s90
      %s93 = sphi 0, %s92
      %s107 = sphi 0, %s93
      %s111 = sphi 0, %s111
      %s113 = sphi 0, %s111
      %s114 = sphi 0, %s113
      %s128 = sphi 0, %s114
      %s132 = sphi 0, %s132
      %s134 = sphi 0, %s132
      %s135 = sphi 0, %s134
      %s149 = sphi 0, %s135
      %s157 = sphi 0, %s159
      %s160 = sphi 0, %s157
      %s161 = sphi 0, %s160
      %s177 = sphi 0, %s161
    $region4: #{tpu_custom_call.1} parent=1 // loop_header_branch
      %17 = sbr.rel (%p15) target = $region8
    $region5: #{tpu_custom_call.1} parent=1 // loop_body
      %s19 = ssub.s32 %s14, 1
      %s20 = ssub.s32 %s14, 2
      %s27 = sadd.s32 1, %s22
      %p28 = scmp.ge.s32.totalorder %s27, 2
      %s29 = scalar_select %p28, 0, %s27
      %s30 = sadd.s32 1, %s21
      %s31 = scalar_select %p28, %s30, %s21
      %p32 = scmp.ge.s32.totalorder %s31, 1
      %s33 = scalar_select %p32, 0, %s31
      %s34 = ssub.s32 %s21, %s33
      %s35 = ssub.s32 %s22, %s29
      %s36 = sor.u32 %s34, %s35
      %p37 = scmp.eq.s32.totalorder %s36, 0
      %s39 = sadd.s32 %s38, 1
      %s40 = scalar_select %p37, %s38, %s39
      %p43 = pneg %p37
      %p44 = scmp.eq.s32.totalorder %s14, 1
      %p45 = por %p43, %p44
      %p46 = scmp.ne.s32.totalorder %s38, %s41
      %p47 = scmp.eq.s32.totalorder %s14, 0
      %p48 = por %p46, %p47
      %p49 = scmp.ne.s32.totalorder %s38, %s41
      %p50 = scmp.eq.s32.totalorder %s19, 1
      %p51 = por %p49, %p50
      %p52 = scmp.ne.s32.totalorder %s41, %s42
      %p53 = scmp.eq.s32.totalorder %s19, 0
      %p54 = por %p52, %p53
      %p55 = scmp.ne.s32.totalorder %s41, %s42
      %p56 = scmp.eq.s32.totalorder %s20, 1
      %p57 = por %p55, %p56
      %p59 = scmp.ne.s32.totalorder %s42, %s58
      %p60 = scmp.eq.s32.totalorder %s20, 0
      %p61 = por %p59, %p60
      %s62 = ssub.s32 %s21, %s33
      %s63 = ssub.s32 %s22, %s29
      %s64 = sor.u32 %s62, %s63
      %p65 = scmp.eq.s32.totalorder %s64, 0
      %s67 = sadd.s32 %s66, 1
      %s68 = scalar_select %p65, %s66, %s67
      %p71 = pneg %p65
      %p72 = scmp.eq.s32.totalorder %s14, 1
      %p73 = por %p71, %p72
      %p74 = scmp.ne.s32.totalorder %s66, %s69
      %p75 = scmp.eq.s32.totalorder %s14, 0
      %p76 = por %p74, %p75
      %p77 = scmp.ne.s32.totalorder %s66, %s69
      %p78 = scmp.eq.s32.totalorder %s19, 1
      %p79 = por %p77, %p78
      %p80 = scmp.ne.s32.totalorder %s69, %s70
      %p81 = scmp.eq.s32.totalorder %s19, 0
      %p82 = por %p80, %p81
      %p83 = scmp.ne.s32.totalorder %s69, %s70
      %p84 = scmp.eq.s32.totalorder %s20, 1
      %p85 = por %p83, %p84
      %p87 = scmp.ne.s32.totalorder %s70, %s86
      %p88 = scmp.eq.s32.totalorder %s20, 0
      %p89 = por %p87, %p88
      %s91 = sadd.s32 %s90, 1
      %p94 = scmp.eq.s32.totalorder %s14, 1
      %p95 = scmp.ne.s32.totalorder %s90, %s92
      %p96 = scmp.eq.s32.totalorder %s14, 0
      %p97 = por %p95, %p96
      %p98 = scmp.ne.s32.totalorder %s90, %s92
      %p99 = scmp.eq.s32.totalorder %s19, 1
      %p100 = por %p98, %p99
      %p101 = scmp.ne.s32.totalorder %s92, %s93
      %p102 = scmp.eq.s32.totalorder %s19, 0
      %p103 = por %p101, %p102
      %p104 = scmp.ne.s32.totalorder %s92, %s93
      %p105 = scmp.eq.s32.totalorder %s20, 1
      %p106 = por %p104, %p105
      %p108 = scmp.ne.s32.totalorder %s93, %s107
      %p109 = scmp.eq.s32.totalorder %s20, 0
      %p110 = por %p108, %p109
      %s112 = sadd.s32 %s111, 1
      %p115 = scmp.eq.s32.totalorder %s14, 1
      %p116 = scmp.ne.s32.totalorder %s111, %s113
      %p117 = scmp.eq.s32.totalorder %s14, 0
      %p118 = por %p116, %p117
      %p119 = scmp.ne.s32.totalorder %s111, %s113
      %p120 = scmp.eq.s32.totalorder %s19, 1
      %p121 = por %p119, %p120
      %p122 = scmp.ne.s32.totalorder %s113, %s114
      %p123 = scmp.eq.s32.totalorder %s19, 0
      %p124 = por %p122, %p123
      %p125 = scmp.ne.s32.totalorder %s113, %s114
      %p126 = scmp.eq.s32.totalorder %s20, 1
      %p127 = por %p125, %p126
      %p129 = scmp.ne.s32.totalorder %s114, %s128
      %p130 = scmp.eq.s32.totalorder %s20, 0
      %p131 = por %p129, %p130
      %s133 = sadd.s32 %s132, 1
      %p136 = scmp.eq.s32.totalorder %s14, 1
      %p137 = scmp.ne.s32.totalorder %s132, %s134
      %p138 = scmp.eq.s32.totalorder %s14, 0
      %p139 = por %p137, %p138
      %p140 = scmp.ne.s32.totalorder %s132, %s134
      %p141 = scmp.eq.s32.totalorder %s19, 1
      %p142 = por %p140, %p141
      %p143 = scmp.ne.s32.totalorder %s134, %s135
      %p144 = scmp.eq.s32.totalorder %s19, 0
      %p145 = por %p143, %p144
      %p146 = scmp.ne.s32.totalorder %s134, %s135
      %p147 = scmp.eq.s32.totalorder %s20, 1
      %p148 = por %p146, %p147
      %p150 = scmp.ne.s32.totalorder %s135, %s149
      %p151 = scmp.eq.s32.totalorder %s20, 0
      %p152 = por %p150, %p151
      %s153 = ssub.s32 %s21, %s33
      %s154 = ssub.s32 %s22, %s29
      %s155 = sor.u32 %s153, %s154
      %p156 = scmp.eq.s32.totalorder %s155, 0
      %s158 = sadd.s32 %s157, 1
      %s159 = scalar_select %p156, %s157, %s158
      %p162 = pneg %p156
      %p163 = scmp.eq.s32.totalorder %s14, 1
      %p164 = por %p162, %p163
      %p165 = scmp.ne.s32.totalorder %s157, %s160
      %p166 = scmp.eq.s32.totalorder %s14, 0
      %p167 = por %p165, %p166
      %p168 = scmp.ne.s32.totalorder %s157, %s160
      %p169 = scmp.eq.s32.totalorder %s19, 1
      %p170 = por %p168, %p169
      %p171 = scmp.ne.s32.totalorder %s160, %s161
      %p172 = scmp.eq.s32.totalorder %s19, 0
      %p173 = por %p171, %p172
      %p174 = scmp.ne.s32.totalorder %s160, %s161
      %p175 = scmp.eq.s32.totalorder %s20, 1
      %p176 = por %p174, %p175
      %p178 = scmp.ne.s32.totalorder %s161, %s177
      %p179 = scmp.eq.s32.totalorder %s20, 0
      %p180 = por %p178, %p179
      %p181 = scmp.le.s32.totalorder 1, %s14
      %p182 = scmp.lt.s32.totalorder %s14, 3
      %p183 = pnand %p181, %p182
      %p184 = pneg %p183
      // Predicated region
      $region9: #{tpu_custom_call.1} parent=5 // pred_check
        _
      $region10: #{tpu_custom_call.1} parent=5 // pred_check_branch
        %186 = sbr.rel (%p183) target = $region12
      $region11: #{tpu_custom_call.1} parent=5 // pred_region
        %s187 = ssub.s32 %s14, 1
        // Predicated region
        $region13: #{tpu_custom_call.1} parent=11 // pred_check
          %p188 = pneg %p103
        $region14: #{tpu_custom_call.1} parent=11 // pred_check_branch
          %190 = sbr.rel (%p188) target = $region16
        $region15: #{tpu_custom_call.1} parent=11 // pred_region
          _
        $region16: #{tpu_custom_call.1} parent=11 // pred_fallthru
          _
        // Predicated region
        $region17: #{tpu_custom_call.1} parent=11 // pred_check
          %p191 = pneg %p124
        $region18: #{tpu_custom_call.1} parent=11 // pred_check_branch
          %193 = sbr.rel (%p191) target = $region20
        $region19: #{tpu_custom_call.1} parent=11 // pred_region
          _
        $region20: #{tpu_custom_call.1} parent=11 // pred_fallthru
          _
        // Predicated region
        $region21: #{tpu_custom_call.1} parent=11 // pred_check
          %p194 = pneg %p145
        $region22: #{tpu_custom_call.1} parent=11 // pred_check_branch
          %196 = sbr.rel (%p194) target = $region24
        $region23: #{tpu_custom_call.1} parent=11 // pred_region
          _
        $region24: #{tpu_custom_call.1} parent=11 // pred_fallthru
          _
      $region12: #{tpu_custom_call.1} parent=5 // pred_fallthru
        _
      %p197 = scmp.lt.s32.totalorder %s14, 2
      // Predicated region
      $region25: #{tpu_custom_call.1} parent=5 // pred_check
        %p198 = pneg %p197
      $region26: #{tpu_custom_call.1} parent=5 // pred_check_branch
        %200 = sbr.rel (%p198) target = $region28
      $region27: #{tpu_custom_call.1} parent=5 // pred_region
        // Predicated region
        $region29: #{tpu_custom_call.1} parent=27 // pred_check
          %p201 = pneg %p48
        $region30: #{tpu_custom_call.1} parent=27 // pred_check_branch
          %203 = sbr.rel (%p201) target = $region32
        $region31: #{tpu_custom_call.1} parent=27 // pred_region
          %p204 = scmp.lt.s32.totalorder %s21, 0
          %s205 = scalar_select %p204, %s21, 0
          %p206 = scmp.lt.s32.totalorder %s22, 1
          %s207 = scalar_select %p206, %s22, 1
          %s208 = smul.addr %s205, 2
          %s209 = sadd.s32 %s207, %s208
          %s210 = smul.addr %s209, 8
          %s211 = scalar_lea.vmem %s0, %s210
        $region32: #{tpu_custom_call.1} parent=27 // pred_fallthru
          _
        // Predicated region
        $region33: #{tpu_custom_call.1} parent=27 // pred_check
          %p212 = pneg %p76
        $region34: #{tpu_custom_call.1} parent=27 // pred_check_branch
          %214 = sbr.rel (%p212) target = $region36
        $region35: #{tpu_custom_call.1} parent=27 // pred_region
          %p215 = scmp.lt.s32.totalorder %s21, 0
          %s216 = scalar_select %p215, %s21, 0
          %p217 = scmp.lt.s32.totalorder %s22, 1
          %s218 = scalar_select %p217, %s22, 1
          %s219 = smul.addr %s218, 2
          %s220 = smul.addr %s216, 4
          %s221 = sadd.s32 %s219, %s220
          %s222 = smul.addr %s221, 8
          %s223 = scalar_lea.vmem %s1, %s222
        $region36: #{tpu_custom_call.1} parent=27 // pred_fallthru
          _
      $region28: #{tpu_custom_call.1} parent=5 // pred_fallthru
        _
      %p224 = scmp.le.s32.totalorder 1, %s14
      %p225 = scmp.lt.s32.totalorder %s14, 3
      %p226 = pnand %p224, %p225
      %p227 = pneg %p226
      // Predicated region
      $region37: #{tpu_custom_call.1} parent=5 // pred_check
        _
      $region38: #{tpu_custom_call.1} parent=5 // pred_check_branch
        %229 = sbr.rel (%p226) target = $region40
      $region39: #{tpu_custom_call.1} parent=5 // pred_region
        %s230 = ssub.s32 %s14, 1
        %p231 = scmp.lt.s32.totalorder %s23, 0
        %s232 = scalar_select %p231, %s23, 0
        %p233 = scmp.lt.s32.totalorder %s24, 1
        %s234 = scalar_select %p233, %s24, 1
        %s235 = smul.addr %s232, 2
        %s236 = sadd.s32 %s234, %s235
        %s237 = smul.addr %s236, 8
        %s238 = scalar_lea.vmem %s0, %s237
        %p239 = pneg %p54
        %p240 = pneg %p51
        %p241 = scmp.lt.s32.totalorder %s23, 0
        %s242 = scalar_select %p241, %s23, 0
        %p243 = scmp.lt.s32.totalorder %s24, 1
        %s244 = scalar_select %p243, %s24, 1
        %s245 = smul.addr %s244, 2
        %s246 = smul.addr %s242, 4
        %s247 = sadd.s32 %s245, %s246
        %s248 = smul.addr %s247, 8
        %s249 = scalar_lea.vmem %s1, %s248
        %p250 = pneg %p82
        %p251 = pneg %p79
        %p252 = pneg %p103
        %p253 = pneg %p100
        %p254 = pneg %p124
        %p255 = pneg %p121
        %p256 = pneg %p145
        %p257 = pneg %p142
        %p258 = pneg %p173
        %p259 = pneg %p170
        %s260 = sand.u32 %s160, 1
        %s261 = scalar_lea.sflag [#allocation3], %s260
        %s262 = sand.u32 %s160, 1
        %s263 = smul.addr %s262, 16
        %s264 = scalar_lea.vmem [#allocation2], %s263
        %p265 = scmp.lt.s32.totalorder %s23, 0
        %s266 = scalar_select %p265, %s23, 0
        %p267 = scmp.lt.s32.totalorder %s24, 1
        %s268 = scalar_select %p267, %s24, 1
        %s269 = smul.addr %s266, 2
        %s270 = sadd.s32 %s268, %s269
        %s271 = smul.addr %s270, 8
        %s272 = scalar_lea.vmem %s0, %s271
        %p273 = scmp.lt.s32.totalorder %s23, 0
        %s274 = scalar_select %p273, %s23, 0
        %p275 = scmp.lt.s32.totalorder %s24, 1
        %s276 = scalar_select %p275, %s24, 1
        %s277 = smul.addr %s276, 2
        %s278 = smul.addr %s274, 4
        %s279 = sadd.s32 %s277, %s278
        %s280 = smul.addr %s279, 8
        %s281 = scalar_lea.vmem %s1, %s280
        %v282 = vld [vmem:[%s272] sm:$0xff]
        %v283 = vld [vmem:[%s2] sm:$0xff]
        %v284 = vld [vmem:[%s2 + $0x8] sm:$0xff]
        %v285 = vld [vmem:[%s2 + $0x10] sm:$0xff]
        %v286 = vld [vmem:[%s2 + $0x18] sm:$0xff]
        %v287 = vld [vmem:[%s2 + $0x20] sm:$0xff]
        %v288 = vld [vmem:[%s2 + $0x28] sm:$0xff]
        %v289 = vld [vmem:[%s2 + $0x30] sm:$0xff]
        %v290 = vld [vmem:[%s2 + $0x38] sm:$0xff]
        %v291 = vld [vmem:[%s2 + $0x40] sm:$0xff]
        %v292 = vld [vmem:[%s3] sm:$0xff]
        %v293 = vld [vmem:[%s4] sm:$0xff]
        %v294 = vld [vmem:[%s4 + $0x8] sm:$0xff]
        %v295 = vld [vmem:[%s4 + $0x10] sm:$0xff]
        %v296 = vld [vmem:[%s4 + $0x18] sm:$0xff]
        %v297 = vlaneseq
        %v298 = vand.u32 %v297, 127
        %vm299 = vcmp.lt.s32.totalorder %v298, 0
        %v300 = vsub.s32 0, %v298
        %v301 = vsel %vm299, %v300, %v298
        %v302 = vshrl.u32 %v301, 4
        %v303 = vand.u32 %v301, 15
        %v304 = vsub.s32 0, %v303
        %v305 = vsel %vm299, %v304, %v303
        %vm306 = vcmp.ne.s32.totalorder %v305, 0
        %vm307 = vcmp.lt.s32.totalorder %v305, 0
        %vm308 = vmand %vm307, %vm306
        %v309 = vadd.s32 %v305, 16
        %v310 = vsel %vm308, %v309, %v305
        %vm311 = vcmp.gt.s32.totalorder %v310, 0
        %v312 = vsel %vm311, 1, 0
        %vm313 = vcmp.eq.s32.totalorder %v312, 1
        %vm314 = vcmp.lt.s32.totalorder %v310, 15
        %v315 = vsel %vm314, 1, 0
        %vm316 = vcmp.eq.s32.totalorder %v315, 1
        %318 = vset.pattern.permute.xlu0 0
        %319 = vperm.xlu0 %318, %v287
        %v320 = vpop.permute.xlu0 %319
        %v322 = vmul.f32 %v282, %v320
        %323 = vrot.lane.b32.xlu0 %v282, 17
        %v324 = vpop.permute.xlu0 %323
        %v325 = vsel %vm313, %v324, 0.0
        %327 = vset.pattern.permute.xlu0 0
        %328 = vperm.xlu0 %327, %v283
        %v329 = vpop.permute.xlu0 %328
        %v331 = vmul.f32 %v325, %v329
        %v332 = vadd.f32 %v322, %v331
        %333 = vrot.lane.b32.xlu0 %v282, 16
        %v334 = vpop.permute.xlu0 %333
        %336 = vset.pattern.permute.xlu0 0
        %337 = vperm.xlu0 %336, %v284
        %v338 = vpop.permute.xlu0 %337
        %v340 = vmul.f32 %v334, %v338
        %v341 = vadd.f32 %v332, %v340
        %342 = vrot.lane.b32.xlu0 %v282, 15
        %v343 = vpop.permute.xlu0 %342
        %v344 = vsel %vm316, %v343, 0.0
        %346 = vset.pattern.permute.xlu0 0
        %347 = vperm.xlu0 %346, %v285
        %v348 = vpop.permute.xlu0 %347
        %v350 = vmul.f32 %v344, %v348
        %v351 = vadd.f32 %v341, %v350
        %352 = vrot.lane.b32.xlu0 %v282, 1
        %v353 = vpop.permute.xlu0 %352
        %v354 = vsel %vm313, %v353, 0.0
        %356 = vset.pattern.permute.xlu0 0
        %357 = vperm.xlu0 %356, %v286
        %v358 = vpop.permute.xlu0 %357
        %v360 = vmul.f32 %v354, %v358
        %v361 = vadd.f32 %v351, %v360
        %362 = vrot.lane.b32.xlu0 %v282, 127
        %v363 = vpop.permute.xlu0 %362
        %v364 = vsel %vm316, %v363, 0.0
        %366 = vset.pattern.permute.xlu0 0
        %367 = vperm.xlu0 %366, %v288
        %v368 = vpop.permute.xlu0 %367
        %v370 = vmul.f32 %v364, %v368
        %v371 = vadd.f32 %v361, %v370
        %372 = vrot.lane.b32.xlu0 %v282, 113
        %v373 = vpop.permute.xlu0 %372
        %v374 = vsel %vm313, %v373, 0.0
        %376 = vset.pattern.permute.xlu0 0
        %377 = vperm.xlu0 %376, %v289
        %v378 = vpop.permute.xlu0 %377
        %v380 = vmul.f32 %v374, %v378
        %v381 = vadd.f32 %v371, %v380
        %382 = vrot.lane.b32.xlu0 %v282, 112
        %v383 = vpop.permute.xlu0 %382
        %385 = vset.pattern.permute.xlu0 0
        %386 = vperm.xlu0 %385, %v290
        %v387 = vpop.permute.xlu0 %386
        %v389 = vmul.f32 %v383, %v387
        %v390 = vadd.f32 %v381, %v389
        %391 = vrot.lane.b32.xlu0 %v282, 111
        %v392 = vpop.permute.xlu0 %391
        %v393 = vsel %vm316, %v392, 0.0
        %395 = vset.pattern.permute.xlu0 0
        %396 = vperm.xlu0 %395, %v291
        %v397 = vpop.permute.xlu0 %396
        %v399 = vmul.f32 %v393, %v397
        %v400 = vadd.f32 %v390, %v399
        %402 = vset.pattern.permute.xlu0 0
        %403 = vperm.xlu0 %402, %v292
        %v404 = vpop.permute.xlu0 %403
        %v406 = vadd.f32 %v400, %v404
        %408 = vset.pattern.permute.xlu0 0
        %409 = vperm.xlu0 %408, %v293
        %v410 = vpop.permute.xlu0 %409
        %v412 = vperm.slane %v406, 0
        %v413 = vmul.f32 %v410, %v412
        %415 = vset.pattern.permute.xlu0 0
        %416 = vperm.xlu0 %415, %v294
        %v417 = vpop.permute.xlu0 %416
        %v419 = vperm.slane %v406, 1
        %v420 = vmul.f32 %v417, %v419
        %v421 = vadd.f32 %v413, %v420
        %423 = vset.pattern.permute.xlu0 0
        %424 = vperm.xlu0 %423, %v295
        %v425 = vpop.permute.xlu0 %424
        %v427 = vperm.slane %v406, 2
        %v428 = vmul.f32 %v425, %v427
        %v429 = vadd.f32 %v421, %v428
        %431 = vset.pattern.permute.xlu0 0
        %432 = vperm.xlu0 %431, %v296
        %v433 = vpop.permute.xlu0 %432
        %v435 = vperm.slane %v406, 3
        %v436 = vmul.f32 %v433, %v435
        %v437 = vadd.f32 %v429, %v436
        %v438 = vperm.slane %v406, 4
        %v439 = vmul.f32 %v410, %v438
        %v440 = vperm.slane %v406, 5
        %v441 = vmul.f32 %v417, %v440
        %v442 = vadd.f32 %v439, %v441
        %v443 = vperm.slane %v406, 6
        %v444 = vmul.f32 %v425, %v443
        %v445 = vadd.f32 %v442, %v444
        %v446 = vperm.slane %v406, 7
        %v447 = vmul.f32 %v433, %v446
        %v448 = vadd.f32 %v445, %v447
        %v449 = vmul.f32 %v437, 0.70710677
        %v450 = vmul.f32 %v448, 0.70710677
        %v451 = vand.u32 2147483647, %v449
        %v452 = vand.u32 2147483647, %v450
        %v453 = vmul.f32 %v451, 0.3275911
        %v454 = vmul.f32 %v452, 0.3275911
        %v455 = vadd.f32 %v453, 1.0
        %v456 = vadd.f32 %v454, 1.0
        %v457 = vrcp.pop %v455
        %v458 = vmul.f32 %v455, %v457
        %v459 = vsub.f32 1.0, %v458
        %v460 = vmul.f32 %v457, %v459
        %v461 = vadd.f32 %v457, %v460
        %vm462 = vweird.f32 %v455
        %vm463 = vweird.f32 %v457
        %vm464 = vmor %vm462, %vm463
        %v465 = vsel %vm464, %v457, %v461
        %v466 = vand.u32 2147483647, %v455
        %vm467 = vcmp.eq.f32.partialorder %v466, 8.507059e+37
        %v468 = vand.u32 %v455, 2147483648
        %v469 = vor.u32 1.1754944e-38, %v468
        %v470 = vsel %vm467, %v469, %v465
        %v471 = vmul.f32 1.0, %v470
        %v472 = vrcp.pop %v456
        %v473 = vmul.f32 %v456, %v472
        %v474 = vsub.f32 1.0, %v473
        %v475 = vmul.f32 %v472, %v474
        %v476 = vadd.f32 %v472, %v475
        %vm477 = vweird.f32 %v456
        %vm478 = vweird.f32 %v472
        %vm479 = vmor %vm477, %vm478
        %v480 = vsel %vm479, %v472, %v476
        %v481 = vand.u32 2147483647, %v456
        %vm482 = vcmp.eq.f32.partialorder %v481, 8.507059e+37
        %v483 = vand.u32 %v456, 2147483648
        %v484 = vor.u32 1.1754944e-38, %v483
        %v485 = vsel %vm482, %v484, %v480
        %v486 = vmul.f32 1.0, %v485
        %v487 = vmul.f32 %v471, 1.0614054
        %v488 = vmul.f32 %v486, 1.0614054
        %v489 = vsub.f32 %v487, 1.4531521
        %v490 = vsub.f32 %v488, 1.4531521
        %v491 = vmul.f32 %v489, %v471
        %v492 = vmul.f32 %v490, %v486
        %v493 = vadd.f32 %v491, 1.4214138
        %v494 = vadd.f32 %v492, 1.4214138
        %v495 = vmul.f32 %v493, %v471
        %v496 = vmul.f32 %v494, %v486
        %v497 = vsub.f32 %v495, 0.28449672
        %v498 = vsub.f32 %v496, 0.28449672
        %v499 = vmul.f32 %v497, %v471
        %v500 = vmul.f32 %v498, %v486
        %v501 = vadd.f32 %v499, 0.2548296
        %v502 = vadd.f32 %v500, 0.2548296
        %v503 = vmul.f32 %v501, %v471
        %v504 = vmul.f32 %v502, %v486
        %v505 = vsub.f32 0.0, %v451
        %v506 = vsub.f32 0.0, %v452
        %v507 = vmul.f32 %v505, %v451
        %v508 = vmul.f32 %v506, %v452
        %v509 = vmul.f32 %v507, 1.442695
        %v510 = vpow.pop %v509
        %v511 = vmul.f32 %v508, 1.442695
        %v512 = vpow.pop %v511
        %v513 = vmul.f32 %v503, %v510
        %v514 = vmul.f32 %v504, %v512
        %v515 = vsub.f32 1.0, %v513
        %v516 = vsub.f32 1.0, %v514
        %vm517 = vcmp.ge.f32.partialorder %v449, 0.0
        %vm518 = vcmp.ge.f32.partialorder %v450, 0.0
        %v519 = vsub.f32 0.0, %v515
        %v520 = vsub.f32 0.0, %v516
        %v521 = vsel %vm517, %v515, %v519
        %v522 = vsel %vm518, %v516, %v520
        %v523 = vmul.f32 %v437, 0.5
        %v524 = vmul.f32 %v448, 0.5
        %v525 = vadd.f32 %v521, 1.0
        %v526 = vadd.f32 %v522, 1.0
        %v527 = vmul.f32 %v523, %v525
        %v528 = vmul.f32 %v524, %v526
        %529 = vst [vmem:[%s264] sm:$0xff] %v527
        %530 = vst [vmem:[%s264 + $0x8] sm:$0xff] %v528
        %v531 = vld [vmem:[%s281] sm:$0xff]
        %s532 = scalar_lea.vmem %s281, 8
        %v533 = vld [vmem:[%s532] sm:$0xff]
        %535 = vrot.lane.b32.xlu0 %v531, 1
        %v536 = vpop.permute.xlu0 %535
        %vm538 = vcmask 7168
        %v539 = vsel %vm538, 0.0, %v536
        %v540 = vmul.f32 %v539, %v329
        %v541 = vadd.f32 %v322, %v540
        %v542 = vmul.f32 %v531, %v338
        %v543 = vadd.f32 %v541, %v542
        %544 = vrot.lane.b32.xlu0 %v531, 127
        %v545 = vpop.permute.xlu0 %544
        %vm547 = vcmask 121856
        %v548 = vsel %vm547, %v545, 0.0
        %v549 = vmul.f32 %v548, %v348
        %v550 = vadd.f32 %v543, %v549
        %552 = vrot.lane.b32.xlu0 %v282, 1
        %v553 = vpop.permute.xlu0 %552
        %v555 = vsel %vm538, 0.0, %v553
        %v556 = vmul.f32 %v555, %v358
        %v557 = vadd.f32 %v550, %v556
        %558 = vrot.lane.b32.xlu0 %v282, 127
        %v559 = vpop.permute.xlu0 %558
        %v561 = vsel %vm547, %v559, 0.0
        %v562 = vmul.f32 %v561, %v368
        %v563 = vadd.f32 %v557, %v562
        %564 = vrot.lane.b32.xlu0 %v282, 113
        %v565 = vpop.permute.xlu0 %564
        %v567 = vsel %vm538, 0.0, %v565
        %v568 = vmul.f32 %v567, %v378
        %v569 = vadd.f32 %v563, %v568
        %v570 = vmul.f32 %v282, %v387
        %572 = vrot.lane.b32.xlu0 %v570, 112
        %v573 = vpop.permute.xlu0 %572
        %v575 = vadd.f32 %v569, %v573
        %576 = vrot.lane.b32.xlu0 %v282, 111
        %v577 = vpop.permute.xlu0 %576
        %v579 = vsel %vm547, %v577, 0.0
        %v580 = vmul.f32 %v579, %v397
        %v581 = vadd.f32 %v575, %v580
        %v582 = vadd.f32 %v581, %v404
        %v583 = vperm.slane %v582, 0
        %v584 = vmul.f32 %v410, %v583
        %v585 = vperm.slane %v582, 1
        %v586 = vmul.f32 %v417, %v585
        %v587 = vadd.f32 %v584, %v586
        %v588 = vperm.slane %v582, 2
        %v589 = vmul.f32 %v425, %v588
        %v590 = vadd.f32 %v587, %v589
        %v591 = vperm.slane %v582, 3
        %v592 = vmul.f32 %v433, %v591
        %v593 = vadd.f32 %v590, %v592
        %v594 = vperm.slane %v582, 4
        %v595 = vmul.f32 %v410, %v594
        %v596 = vperm.slane %v582, 5
        %v597 = vmul.f32 %v417, %v596
        %v598 = vadd.f32 %v595, %v597
        %v599 = vperm.slane %v582, 6
        %v600 = vmul.f32 %v425, %v599
        %v601 = vadd.f32 %v598, %v600
        %v602 = vperm.slane %v582, 7
        %v603 = vmul.f32 %v433, %v602
        %v604 = vadd.f32 %v601, %v603
        %v605 = vmul.f32 %v593, 0.70710677
        %v606 = vmul.f32 %v604, 0.70710677
        %v607 = vand.u32 2147483647, %v605
        %v608 = vand.u32 2147483647, %v606
        %v609 = vmul.f32 %v607, 0.3275911
        %v610 = vmul.f32 %v608, 0.3275911
        %v611 = vadd.f32 %v609, 1.0
        %v612 = vadd.f32 %v610, 1.0
        %v613 = vrcp.pop %v611
        %v614 = vmul.f32 %v611, %v613
        %v615 = vsub.f32 1.0, %v614
        %v616 = vmul.f32 %v613, %v615
        %v617 = vadd.f32 %v613, %v616
        %vm618 = vweird.f32 %v611
        %vm619 = vweird.f32 %v613
        %vm620 = vmor %vm618, %vm619
        %v621 = vsel %vm620, %v613, %v617
        %v622 = vand.u32 2147483647, %v611
        %vm623 = vcmp.eq.f32.partialorder %v622, 8.507059e+37
        %v624 = vand.u32 %v611, 2147483648
        %v625 = vor.u32 1.1754944e-38, %v624
        %v626 = vsel %vm623, %v625, %v621
        %v627 = vmul.f32 1.0, %v626
        %v628 = vrcp.pop %v612
        %v629 = vmul.f32 %v612, %v628
        %v630 = vsub.f32 1.0, %v629
        %v631 = vmul.f32 %v628, %v630
        %v632 = vadd.f32 %v628, %v631
        %vm633 = vweird.f32 %v612
        %vm634 = vweird.f32 %v628
        %vm635 = vmor %vm633, %vm634
        %v636 = vsel %vm635, %v628, %v632
        %v637 = vand.u32 2147483647, %v612
        %vm638 = vcmp.eq.f32.partialorder %v637, 8.507059e+37
        %v639 = vand.u32 %v612, 2147483648
        %v640 = vor.u32 1.1754944e-38, %v639
        %v641 = vsel %vm638, %v640, %v636
        %v642 = vmul.f32 1.0, %v641
        %v643 = vmul.f32 %v627, 1.0614054
        %v644 = vmul.f32 %v642, 1.0614054
        %v645 = vsub.f32 %v643, 1.4531521
        %v646 = vsub.f32 %v644, 1.4531521
        %v647 = vmul.f32 %v645, %v627
        %v648 = vmul.f32 %v646, %v642
        %v649 = vadd.f32 %v647, 1.4214138
        %v650 = vadd.f32 %v648, 1.4214138
        %v651 = vmul.f32 %v649, %v627
        %v652 = vmul.f32 %v650, %v642
        %v653 = vsub.f32 %v651, 0.28449672
        %v654 = vsub.f32 %v652, 0.28449672
        %v655 = vmul.f32 %v653, %v627
        %v656 = vmul.f32 %v654, %v642
        %v657 = vadd.f32 %v655, 0.2548296
        %v658 = vadd.f32 %v656, 0.2548296
        %v659 = vmul.f32 %v657, %v627
        %v660 = vmul.f32 %v658, %v642
        %v661 = vsub.f32 0.0, %v607
        %v662 = vsub.f32 0.0, %v608
        %v663 = vmul.f32 %v661, %v607
        %v664 = vmul.f32 %v662, %v608
        %v665 = vmul.f32 %v663, 1.442695
        %v666 = vpow.pop %v665
        %v667 = vmul.f32 %v664, 1.442695
        %v668 = vpow.pop %v667
        %v669 = vmul.f32 %v659, %v666
        %v670 = vmul.f32 %v660, %v668
        %v671 = vsub.f32 1.0, %v669
        %v672 = vsub.f32 1.0, %v670
        %vm673 = vcmp.ge.f32.partialorder %v605, 0.0
        %vm674 = vcmp.ge.f32.partialorder %v606, 0.0
        %v675 = vsub.f32 0.0, %v671
        %v676 = vsub.f32 0.0, %v672
        %v677 = vsel %vm673, %v671, %v675
        %v678 = vsel %vm674, %v672, %v676
        %v679 = vmul.f32 %v593, 0.5
        %v680 = vmul.f32 %v604, 0.5
        %v681 = vadd.f32 %v677, 1.0
        %v682 = vadd.f32 %v678, 1.0
        %v683 = vmul.f32 %v679, %v681
        %v684 = vmul.f32 %v680, %v682
        %685 = vrot.lane.b32.xlu0 %v282, 33
        %v686 = vpop.permute.xlu0 %685
        %v688 = vsel %vm538, 0.0, %v686
        %v689 = vmul.f32 %v688, %v329
        %691 = vrot.lane.b32.xlu0 %v689, 112
        %v692 = vpop.permute.xlu0 %691
        %v694 = vadd.f32 %v322, %v692
        %v695 = vmul.f32 %v282, %v338
        %697 = vrot.lane.b32.xlu0 %v695, 16
        %v698 = vpop.permute.xlu0 %697
        %v700 = vadd.f32 %v694, %v698
        %701 = vrot.lane.b32.xlu0 %v282, 31
        %v702 = vpop.permute.xlu0 %701
        %v704 = vsel %vm547, %v702, 0.0
        %v705 = vmul.f32 %v704, %v348
        %707 = vrot.lane.b32.xlu0 %v705, 112
        %v708 = vpop.permute.xlu0 %707
        %v710 = vadd.f32 %v700, %v708
        %711 = vrot.lane.b32.xlu0 %v282, 17
        %v712 = vpop.permute.xlu0 %711
        %v714 = vsel %vm538, 0.0, %v712
        %v715 = vmul.f32 %v714, %v358
        %717 = vrot.lane.b32.xlu0 %v715, 112
        %v718 = vpop.permute.xlu0 %717
        %v720 = vadd.f32 %v710, %v718
        %721 = vrot.lane.b32.xlu0 %v282, 15
        %v722 = vpop.permute.xlu0 %721
        %v724 = vsel %vm547, %v722, 0.0
        %v725 = vmul.f32 %v724, %v368
        %727 = vrot.lane.b32.xlu0 %v725, 112
        %v728 = vpop.permute.xlu0 %727
        %v730 = vadd.f32 %v720, %v728
        %732 = vrot.lane.b32.xlu0 %v533, 1
        %v733 = vpop.permute.xlu0 %732
        %v735 = vsel %vm538, 0.0, %v733
        %v736 = vmul.f32 %v735, %v378
        %738 = vrot.lane.b32.xlu0 %v736, 112
        %v739 = vpop.permute.xlu0 %738
        %v741 = vadd.f32 %v730, %v739
        %v742 = vmul.f32 %v533, %v387
        %744 = vrot.lane.b32.xlu0 %v742, 112
        %v745 = vpop.permute.xlu0 %744
        %v747 = vadd.f32 %v741, %v745
        %748 = vrot.lane.b32.xlu0 %v533, 127
        %v749 = vpop.permute.xlu0 %748
        %v751 = vsel %vm547, %v749, 0.0
        %v752 = vmul.f32 %v751, %v397
        %754 = vrot.lane.b32.xlu0 %v752, 112
        %v755 = vpop.permute.xlu0 %754
        %v757 = vadd.f32 %v747, %v755
        %v758 = vadd.f32 %v757, %v404
        %v759 = vperm.slane %v758, 0
        %v760 = vmul.f32 %v410, %v759
        %v761 = vperm.slane %v758, 1
        %v762 = vmul.f32 %v417, %v761
        %v763 = vadd.f32 %v760, %v762
        %v764 = vperm.slane %v758, 2
        %v765 = vmul.f32 %v425, %v764
        %v766 = vadd.f32 %v763, %v765
        %v767 = vperm.slane %v758, 3
        %v768 = vmul.f32 %v433, %v767
        %v769 = vadd.f32 %v766, %v768
        %v770 = vperm.slane %v758, 4
        %v771 = vmul.f32 %v410, %v770
        %v772 = vperm.slane %v758, 5
        %v773 = vmul.f32 %v417, %v772
        %v774 = vadd.f32 %v771, %v773
        %v775 = vperm.slane %v758, 6
        %v776 = vmul.f32 %v425, %v775
        %v777 = vadd.f32 %v774, %v776
        %v778 = vperm.slane %v758, 7
        %v779 = vmul.f32 %v433, %v778
        %v780 = vadd.f32 %v777, %v779
        %v781 = vmul.f32 %v769, 0.70710677
        %v782 = vmul.f32 %v780, 0.70710677
        %v783 = vand.u32 2147483647, %v781
        %v784 = vand.u32 2147483647, %v782
        %v785 = vmul.f32 %v783, 0.3275911
        %v786 = vmul.f32 %v784, 0.3275911
        %v787 = vadd.f32 %v785, 1.0
        %v788 = vadd.f32 %v786, 1.0
        %v789 = vrcp.pop %v787
        %v790 = vmul.f32 %v787, %v789
        %v791 = vsub.f32 1.0, %v790
        %v792 = vmul.f32 %v789, %v791
        %v793 = vadd.f32 %v789, %v792
        %vm794 = vweird.f32 %v787
        %vm795 = vweird.f32 %v789
        %vm796 = vmor %vm794, %vm795
        %v797 = vsel %vm796, %v789, %v793
        %v798 = vand.u32 2147483647, %v787
        %vm799 = vcmp.eq.f32.partialorder %v798, 8.507059e+37
        %v800 = vand.u32 %v787, 2147483648
        %v801 = vor.u32 1.1754944e-38, %v800
        %v802 = vsel %vm799, %v801, %v797
        %v803 = vmul.f32 1.0, %v802
        %v804 = vrcp.pop %v788
        %v805 = vmul.f32 %v788, %v804
        %v806 = vsub.f32 1.0, %v805
        %v807 = vmul.f32 %v804, %v806
        %v808 = vadd.f32 %v804, %v807
        %vm809 = vweird.f32 %v788
        %vm810 = vweird.f32 %v804
        %vm811 = vmor %vm809, %vm810
        %v812 = vsel %vm811, %v804, %v808
        %v813 = vand.u32 2147483647, %v788
        %vm814 = vcmp.eq.f32.partialorder %v813, 8.507059e+37
        %v815 = vand.u32 %v788, 2147483648
        %v816 = vor.u32 1.1754944e-38, %v815
        %v817 = vsel %vm814, %v816, %v812
        %v818 = vmul.f32 1.0, %v817
        %v819 = vmul.f32 %v803, 1.0614054
        %v820 = vmul.f32 %v818, 1.0614054
        %v821 = vsub.f32 %v819, 1.4531521
        %v822 = vsub.f32 %v820, 1.4531521
        %v823 = vmul.f32 %v821, %v803
        %v824 = vmul.f32 %v822, %v818
        %v825 = vadd.f32 %v823, 1.4214138
        %v826 = vadd.f32 %v824, 1.4214138
        %v827 = vmul.f32 %v825, %v803
        %v828 = vmul.f32 %v826, %v818
        %v829 = vsub.f32 %v827, 0.28449672
        %v830 = vsub.f32 %v828, 0.28449672
        %v831 = vmul.f32 %v829, %v803
        %v832 = vmul.f32 %v830, %v818
        %v833 = vadd.f32 %v831, 0.2548296
        %v834 = vadd.f32 %v832, 0.2548296
        %v835 = vmul.f32 %v833, %v803
        %v836 = vmul.f32 %v834, %v818
        %v837 = vsub.f32 0.0, %v783
        %v838 = vsub.f32 0.0, %v784
        %v839 = vmul.f32 %v837, %v783
        %v840 = vmul.f32 %v838, %v784
        %v841 = vmul.f32 %v839, 1.442695
        %v842 = vpow.pop %v841
        %v843 = vmul.f32 %v840, 1.442695
        %v844 = vpow.pop %v843
        %v845 = vmul.f32 %v835, %v842
        %v846 = vmul.f32 %v836, %v844
        %v847 = vsub.f32 1.0, %v845
        %v848 = vsub.f32 1.0, %v846
        %vm849 = vcmp.ge.f32.partialorder %v781, 0.0
        %vm850 = vcmp.ge.f32.partialorder %v782, 0.0
        %v851 = vsub.f32 0.0, %v847
        %v852 = vsub.f32 0.0, %v848
        %v853 = vsel %vm849, %v847, %v851
        %v854 = vsel %vm850, %v848, %v852
        %v855 = vmul.f32 %v769, 0.5
        %v856 = vmul.f32 %v780, 0.5
        %v857 = vadd.f32 %v853, 1.0
        %v858 = vadd.f32 %v854, 1.0
        %v859 = vmul.f32 %v855, %v857
        %v860 = vmul.f32 %v856, %v858
        %vm861 = vcmask 130048
        %862 = vst.msk [vmem:[%s264] sm:$0xff] %vm861, %v683
        %863 = vst.msk [vmem:[%s264 + $0x8] sm:$0xff] %vm861, %v684
        %vm864 = vcmask 1048448
        %865 = vst.msk [vmem:[%s264] sm:$0xff] %vm864, %v859
        %866 = vst.msk [vmem:[%s264 + $0x8] sm:$0xff] %vm864, %v860
        %s867 = sand.u32 %s160, 1
        %s868 = scalar_lea.sflag [#allocation3], %s867
        %s869 = sand.u32 %s160, 1
        %s870 = smul.addr %s869, 16
        %s871 = scalar_lea.vmem [#allocation2], %s870
        // Predicated region
        $region41: #{tpu_custom_call.1} parent=39 // pred_check
          %p872 = pneg %p170
        $region42: #{tpu_custom_call.1} parent=39 // pred_check_branch
          %874 = sbr.rel (%p872) target = $region44
        $region43: #{tpu_custom_call.1} parent=39 // pred_region
          %876 = vsyncadd %s868, 0
          %s877 = smul.addr %s23, 4
          %s878 = sadd.s32 %s24, %s877
          %s879 = smul.addr %s878, 8
          %s880 = scalar_lea.hbm %s5, %s879
          %s881 = sshll.u32 %s871, 4
          %s882 = int_to_ptr.vmem [resolvable:$true] %s881
          %s883 = sshll.u32 %s880, 4
          %s884 = int_to_ptr.hbm [resolvable:$true] %s883
          %889 = dma.vmem_to_hbm [thread:$0]  %s882, 256, %s884, %s868, 128, 256, 8
        $region44: #{tpu_custom_call.1} parent=39 // pred_fallthru
          _
      $region40: #{tpu_custom_call.1} parent=5 // pred_fallthru
        _
      %p890 = scmp.le.s32.totalorder 2, %s14
      // Predicated region
      $region45: #{tpu_custom_call.1} parent=5 // pred_check
        %p891 = pneg %p890
      $region46: #{tpu_custom_call.1} parent=5 // pred_check_branch
        %893 = sbr.rel (%p891) target = $region48
      $region47: #{tpu_custom_call.1} parent=5 // pred_region
        %s894 = ssub.s32 %s14, 2
        // Predicated region
        $region49: #{tpu_custom_call.1} parent=47 // pred_check
          %p895 = pneg %p176
        $region50: #{tpu_custom_call.1} parent=47 // pred_check_branch
          %897 = sbr.rel (%p895) target = $region52
        $region51: #{tpu_custom_call.1} parent=47 // pred_region
          %s898 = sand.u32 %s161, 1
          %s899 = scalar_lea.sflag [#allocation3], %s898
          %s900 = sand.u32 %s161, 1
          %s901 = smul.addr %s900, 16
          %s902 = scalar_lea.vmem [#allocation2], %s901
          %904 = dma.done %s899, 256
        $region52: #{tpu_custom_call.1} parent=47 // pred_fallthru
          _
      $region48: #{tpu_custom_call.1} parent=5 // pred_fallthru
        _
    $region6: #{tpu_custom_call.1} parent=1 // loop_footer
      %s18 = sadd.s32 1, %s14
    $region7: #{tpu_custom_call.1} parent=1 // loop_footer_branch
      %13 = sbr.rel target = $region3
    $region8: #{tpu_custom_call.1} parent=1 // loop_exit
      _
    %905 = vsyncpa [#allocation3], 1
    %s906 = scalar_lea.sflag [#allocation3], 1
    %907 = vsyncpa %s906, 1

</llo_original>
